<compile_context>
chip_gen: v6e
topology: v6e:2x2x1
jax: 0.10.0
libtpu: 0.0.40
codegen_flags: <defaults>
</compile_context>

<pallas_src>
import functools

import jax
import jax.numpy as jnp
from jax.experimental import pallas as pl
from jax.experimental.pallas import tpu as pltpu

CAM_LANES = 128  # lane-dense width of the packed CAM output slab


# --------------------------- fused Pallas kernel ---------------------------- #

def _generic_fused_kernel(
    xim_ref,             # (1, 2, 2, Hf, Wf, 27) bf16: conv1 im2col, 4 output-parity phases
    w1_ref, b1_ref,      # (27, 8)  bf16 / (1, 8)  f32   folded conv1
    w2_ref, b2_ref,      # (72, 16) bf16 / (1, 16) f32   folded conv2 (stride 2)
    w3_ref, b3_ref,      # (144,32) bf16 / (1, 32) f32   folded conv3
    wc_ref, bc_ref,      # (32, C)  f32  / (1, C)  f32   classifier
    wfu_ref, bfu_ref,    # (48, 32) bf16 / (1, 32) f32   attention fuse 1x1
    wcam_ref, bcam_ref,  # (32, 128) bf16 / (1, 128) f32 packed CAM head
    logits_ref,          # out (1, 1, C) f32
    labels_ref,          # out (1, 1, 1) int32
    maps_ref,            # out (1, HW, 128) bf16 lane-dense CAM slab
    *, Hf, Wf, C,
):
    f32 = jnp.float32
    bf16 = jnp.bfloat16
    HW = Hf * Wf

    # ---- conv1: 3x3, stride 1, pad 1 -- ONE dot per output-parity phase ------
    # Each phase result is kept as a zero-padded VALUE (top row + left col halo)
    # so the stride-2 conv2 below only needs contiguous static windows.
    zr1 = jnp.zeros((1, Wf, 8), f32)
    zc1 = jnp.zeros((Hf + 1, 1, 8), f32)
    f1pad = [[None, None], [None, None]]
    for r in range(2):
        for s in range(2):
            patch = xim_ref[0, r, s].reshape(HW, 27)                    # bf16
            acc = jnp.dot(patch, w1_ref[...], preferred_element_type=f32)
            f1 = jnp.maximum(acc + b1_ref[...], 0.0).reshape(Hf, Wf, 8)
            f1pad[r][s] = jnp.concatenate(
                [zc1, jnp.concatenate([zr1, f1], axis=0)], axis=1)      # (Hf+1, Wf+1, 8)

    # ---- conv2: 3x3, stride 2, pad 1 -- taps folded into one (HW, 72) dot ----
    # tap k: k=0 -> phase 1 rows [0:Hf] (top halo); k=1 -> phase 0 rows [1:Hf+1];
    #        k=2 -> phase 1 rows [1:Hf+1]   (same pattern for columns).
    sel = ((1, 0), (0, 1), (1, 1))
    taps2 = []
    for k in range(3):
        rp, ro = sel[k]
        for l in range(3):
            cp, co = sel[l]
            taps2.append(f1pad[rp][cp][ro:ro + Hf, co:co + Wf, :].reshape(HW, 8))
    p2 = jnp.concatenate(taps2, axis=-1).astype(bf16)                   # (HW, 72)
    f2 = jnp.maximum(jnp.dot(p2, w2_ref[...], preferred_element_type=f32)
                     + b2_ref[...], 0.0)                                # (HW, 16) feature A

    # ---- conv3: 3x3, stride 1, pad 1 -- taps folded into one (HW, 144) dot ---
    zr2 = jnp.zeros((1, Wf, 16), f32)
    zc2 = jnp.zeros((Hf + 2, 1, 16), f32)
    f2pad = jnp.concatenate(
        [zc2, jnp.concatenate([zr2, f2.reshape(Hf, Wf, 16), zr2], axis=0), zc2],
        axis=1)                                                          # (Hf+2, Wf+2, 16)
    taps3 = [f2pad[k:k + Hf, l:l + Wf, :].reshape(HW, 16)
             for k in range(3) for l in range(3)]
    p3 = jnp.concatenate(taps3, axis=-1).astype(bf16)                   # (HW, 144)
    f3 = jnp.maximum(jnp.dot(p3, w3_ref[...], preferred_element_type=f32)
                     + b3_ref[...], 0.0)                                # (HW, 32) feature B

    # ---- global average pool (sublane reduction) + classifier + fused argmax -
    pooled = jnp.sum(f3, axis=0, keepdims=True) * (1.0 / HW)            # (1, 32)
    logits = jnp.dot(pooled, wc_ref[...], preferred_element_type=f32) + bc_ref[...]
    logits_ref[0] = logits                                              # (1, C)

    m = jnp.max(logits, axis=-1, keepdims=True)
    idx = jax.lax.broadcasted_iota(jnp.int32, logits.shape, 1)
    cand = jnp.where(logits == m, idx, jnp.int32(C))
    labels_ref[0] = jnp.min(cand, axis=-1, keepdims=True)               # first max index

    # ---- attention mechanism: 1x1 fuse over [f2 ; f3], then packed CAM head --
    att_in = jnp.concatenate([f2, f3], axis=-1).astype(bf16)            # (HW, 48)
    fused = jnp.maximum(jnp.dot(att_in, wfu_ref[...], preferred_element_type=f32)
                        + bfu_ref[...], 0.0)                            # (HW, 32)
    cam = jnp.dot(fused.astype(bf16), wcam_ref[...],
                  preferred_element_type=f32) + bcam_ref[...]           # (HW, 128)
    lane = jax.lax.broadcasted_iota(jnp.int32, cam.shape, 1)
    is_a = (lane >= C) & (lane < 2 * C)
    # cols [0:C] = raw CAMs `c`, cols [C:2C] = sigmoid attention maps `a`
    maps_ref[0] = jnp.where(is_a, jax.nn.sigmoid(cam), cam).astype(maps_ref.dtype)


# ------------------------------- JAX wrapper -------------------------------- #

def init_params(key, num_classes):
    ks = jax.random.split(key, 12)
    p = {}
    # backbone
    p["w1"] = 0.1 * jax.random.normal(ks[0], (3, 3, 3, 8), jnp.float32)
    p["b1"] = 0.01 * jax.random.normal(ks[1], (8,), jnp.float32)
    p["w2"] = 0.1 * jax.random.normal(ks[2], (3, 3, 8, 16), jnp.float32)
    p["b2"] = 0.01 * jax.random.normal(ks[3], (16,), jnp.float32)
    p["w3"] = 0.1 * jax.random.normal(ks[4], (3, 3, 16, 32), jnp.float32)
    p["b3"] = 0.01 * jax.random.normal(ks[5], (32,), jnp.float32)
    p["wc"] = 0.1 * jax.random.normal(ks[6], (32, num_classes), jnp.float32)
    p["bc"] = 0.01 * jax.random.normal(ks[7], (num_classes,), jnp.float32)
    # attention mechanism (fuse 1x1 over concat(f2, f3) + class 1x1)
    p["wf"] = 0.1 * jax.random.normal(ks[8], (16 + 32, 32), jnp.float32)
    p["bf"] = 0.01 * jax.random.normal(ks[9], (32,), jnp.float32)
    p["wa"] = 0.1 * jax.random.normal(ks[10], (32, num_classes), jnp.float32)
    p["ba"] = 0.01 * jax.random.normal(ks[11], (num_classes,), jnp.float32)
    return p


def generic_forward(params, x_nchw, num_classes):
    """Eval-mode forward of `Generic`: returns (old_logits, labels, a, c)."""
    # TODO(synk): train_method == 'raw_normalize' branch (torchvision Normalize) and
    # training-mode train_policy/get_loss are not implemented (eval path only).
    assert 2 * num_classes <= CAM_LANES
    x = jnp.transpose(x_nchw, (0, 2, 3, 1)).astype(jnp.float32)          # NCHW -> NHWC
    B, H, W, _ = x.shape
    Hf, Wf = H // 2, W // 2
    HW = Hf * Wf
    C = num_classes
    bf16 = jnp.bfloat16

    # conv1 im2col, split into the 4 output-parity phases (stride-2-friendly):
    # phase (r, s), tap (k, l) -> xpad rows 2i + r + k, cols 2j + s + l.
    xpad = jnp.pad(x, ((0, 0), (1, 1), (1, 1), (0, 0)))                  # (B, H+2, W+2, 3)
    phases = []
    for r in range(2):
        row = []
        for s in range(2):
            taps = [xpad[:, r + k: r + k + 2 * Hf: 2, s + l: s + l + 2 * Wf: 2, :]
                    for k in range(3) for l in range(3)]
            row.append(jnp.concatenate(taps, axis=-1))                   # (B, Hf, Wf, 27)
        phases.append(jnp.stack(row, axis=1))                            # (B, 2, Hf, Wf, 27)
    xim = jnp.stack(phases, axis=1).astype(bf16)                         # (B, 2, 2, Hf, Wf, 27)

    # Fold the 3x3 taps into the contraction dim and pre-cast weights to bf16.
    w1f = params["w1"].reshape(27, 8).astype(bf16)
    w2f = params["w2"].reshape(72, 16).astype(bf16)
    w3f = params["w3"].reshape(144, 32).astype(bf16)
    wfu = params["wf"].astype(bf16)
    # Packed lane-dense CAM head: class weights duplicated into cols [0:C] and [C:2C].
    wcam = (jnp.zeros((32, CAM_LANES), jnp.float32)
            .at[:, :C].set(params["wa"]).at[:, C:2 * C].set(params["wa"])).astype(bf16)
    bcam = (jnp.zeros((1, CAM_LANES), jnp.float32)
            .at[0, :C].set(params["ba"]).at[0, C:2 * C].set(params["ba"]))

    args = (
        xim,
        w1f, params["b1"].reshape(1, -1),
        w2f, params["b2"].reshape(1, -1),
        w3f, params["b3"].reshape(1, -1),
        params["wc"], params["bc"].reshape(1, -1),
        wfu, params["bf"].reshape(1, -1),
        wcam, bcam,
    )

    def batched_spec(arr):
        nd = arr.ndim
        return pl.BlockSpec((1,) + tuple(arr.shape[1:]),
                            lambda b, _nd=nd: (b,) + (0,) * (_nd - 1))

    def resident_spec(arr):
        nd = arr.ndim
        return pl.BlockSpec(tuple(arr.shape), lambda b, _nd=nd: (0,) * _nd)

    in_specs = [batched_spec(xim)] + [resident_spec(a) for a in args[1:]]

    kernel = functools.partial(_generic_fused_kernel, Hf=Hf, Wf=Wf, C=C)

    flops = B * (2 * HW * (27 * 8 + 72 * 16 + 144 * 32 + 48 * 32 + 32 * CAM_LANES)
                 + 2 * 32 * C)
    in_bytes = int(sum(int(a.size) * a.dtype.itemsize for a in args))
    out_bytes = B * (HW * CAM_LANES * 2 + C * 4 + 4)

    logits3, labels3, maps = pl.pallas_call(
        kernel,
        out_shape=(
            jax.ShapeDtypeStruct((B, 1, C), jnp.float32),
            jax.ShapeDtypeStruct((B, 1, 1), jnp.int32),
            jax.ShapeDtypeStruct((B, HW, CAM_LANES), jnp.bfloat16),
        ),
        grid=(B,),
        in_specs=in_specs,
        out_specs=(
            pl.BlockSpec((1, 1, C), lambda b: (b, 0, 0)),
            pl.BlockSpec((1, 1, 1), lambda b: (b, 0, 0)),
            pl.BlockSpec((1, HW, CAM_LANES), lambda b: (b, 0, 0)),
        ),
        compiler_params=pltpu.CompilerParams(
            dimension_semantics=("parallel",),        # shard batch across TCs on v7x
            vmem_limit_bytes=32 * 1024 * 1024,        # safe on v5e/v6e/v7x scoped limits
        ),
        cost_estimate=pl.CostEstimate(
            flops=flops,
            transcendentals=B * HW * CAM_LANES,
            bytes_accessed=in_bytes + out_bytes,
        ),
    )(*args)

    logits = logits3[:, 0, :]
    labels = labels3[:, 0, 0]
    c_flat = maps[:, :, :C].astype(jnp.float32)
    a_flat = maps[:, :, C:2 * C].astype(jnp.float32)
    c = jnp.transpose(c_flat.reshape(B, Hf, Wf, C), (0, 3, 1, 2))        # NCHW raw CAMs
    a = jnp.transpose(a_flat.reshape(B, Hf, Wf, C), (0, 3, 1, 2))        # sigmoid maps

    # eval mode: forward returns old_logits (labels, a, c are the stashed attributes)
    return logits, labels, a, c


if __name__ == "__main__":
    num_classes = 10
    key = jax.random.PRNGKey(0)
    k_param, k_x = jax.random.split(key)
    params = init_params(k_param, num_classes)
    x = jax.random.normal(k_x, (2, 3, 16, 16), jnp.float32)  # NCHW, like PyTorch

    fwd = jax.jit(generic_forward, static_argnums=2)
    logits, labels, a, c = fwd(params, x, num_classes)
    jax.block_until_ready((logits, labels, a, c))

    assert logits.shape == (2, num_classes)
    assert labels.shape == (2,)
    assert a.shape == (2, num_classes, 8, 8)
    assert c.shape == (2, num_classes, 8, 8)
    # internal consistency: labels = argmax(logits); a = sigmoid(c)
    assert bool(jnp.all(labels == jnp.argmax(logits, axis=1)))
    assert bool(jnp.allclose(a, jax.nn.sigmoid(c), atol=1e-2))
    print("KERNEL_OK")
</pallas_src>

<mosaic_0001>
module attributes {stable_mosaic.version = 11 : i64} {
  func.func @_generic_fused_kernel(%arg0: i32, %arg1: memref<1x2x2x8x8x27xbf16, #tpu.memory_space<vmem>>, %arg2: memref<27x8xbf16, #tpu.memory_space<vmem>>, %arg3: memref<1x8xf32, #tpu.memory_space<vmem>>, %arg4: memref<72x16xbf16, #tpu.memory_space<vmem>>, %arg5: memref<1x16xf32, #tpu.memory_space<vmem>>, %arg6: memref<144x32xbf16, #tpu.memory_space<vmem>>, %arg7: memref<1x32xf32, #tpu.memory_space<vmem>>, %arg8: memref<32x10xf32, #tpu.memory_space<vmem>>, %arg9: memref<1x10xf32, #tpu.memory_space<vmem>>, %arg10: memref<48x32xbf16, #tpu.memory_space<vmem>>, %arg11: memref<1x32xf32, #tpu.memory_space<vmem>>, %arg12: memref<32x128xbf16, #tpu.memory_space<vmem>>, %arg13: memref<1x128xf32, #tpu.memory_space<vmem>>, %arg14: memref<1x1x10xf32, #tpu.memory_space<vmem>>, %arg15: memref<1x1x1xi32, #tpu.memory_space<vmem>>, %arg16: memref<1x64x128xbf16, #tpu.memory_space<vmem>>) attributes {dimension_semantics = [#tpu.dimension_semantics<parallel>], iteration_bounds = array<i64: 2>, scalar_prefetch = 0 : i64, scratch_operands = 0 : i64, tpu.core_type = #tpu.core_type<tc>, window_params = [{transform_indices = @transform_0, window_bounds = array<i64: 1, 2, 2, 8, 8, 27>}, {pipeline_mode = #tpu.pipeline_mode<synchronous>, transform_indices = @transform_1, window_bounds = array<i64: 27, 8>}, {pipeline_mode = #tpu.pipeline_mode<synchronous>, transform_indices = @transform_2, window_bounds = array<i64: 1, 8>}, {pipeline_mode = #tpu.pipeline_mode<synchronous>, transform_indices = @transform_3, window_bounds = array<i64: 72, 16>}, {pipeline_mode = #tpu.pipeline_mode<synchronous>, transform_indices = @transform_4, window_bounds = array<i64: 1, 16>}, {pipeline_mode = #tpu.pipeline_mode<synchronous>, transform_indices = @transform_5, window_bounds = array<i64: 144, 32>}, {pipeline_mode = #tpu.pipeline_mode<synchronous>, transform_indices = @transform_6, window_bounds = array<i64: 1, 32>}, {pipeline_mode = #tpu.pipeline_mode<synchronous>, transform_indices = @transform_7, window_bounds = array<i64: 32, 10>}, {pipeline_mode = #tpu.pipeline_mode<synchronous>, transform_indices = @transform_8, window_bounds = array<i64: 1, 10>}, {pipeline_mode = #tpu.pipeline_mode<synchronous>, transform_indices = @transform_9, window_bounds = array<i64: 48, 32>}, {pipeline_mode = #tpu.pipeline_mode<synchronous>, transform_indices = @transform_10, window_bounds = array<i64: 1, 32>}, {pipeline_mode = #tpu.pipeline_mode<synchronous>, transform_indices = @transform_11, window_bounds = array<i64: 32, 128>}, {pipeline_mode = #tpu.pipeline_mode<synchronous>, transform_indices = @transform_12, window_bounds = array<i64: 1, 128>}, {transform_indices = @transform_13, window_bounds = array<i64: 1, 1, 10>}, {transform_indices = @transform_14, window_bounds = array<i64: 1, 1, 1>}, {transform_indices = @transform_15, window_bounds = array<i64: 1, 64, 128>}]} {
    %cst = arith.constant 0.000000e+00 : f32
    %0 = vector.broadcast %cst : f32 to vector<1x8x8xf32>
    %cst_0 = arith.constant 0.000000e+00 : f32
    %1 = vector.broadcast %cst_0 : f32 to vector<9x1x8xf32>
    %c0 = arith.constant 0 : index
    %c0_1 = arith.constant 0 : index
    %c0_2 = arith.constant 0 : index
    %c0_3 = arith.constant 0 : index
    %c0_4 = arith.constant 0 : index
    %c0_5 = arith.constant 0 : index
    %2 = vector.load %arg1[%c0, %c0_1, %c0_2, %c0_3, %c0_4, %c0_5] : memref<1x2x2x8x8x27xbf16, #tpu.memory_space<vmem>>, vector<1x1x1x8x8x27xbf16>
    %3 = vector.shape_cast %2 : vector<1x1x1x8x8x27xbf16> to vector<8x8x27xbf16>
    %4 = vector.shape_cast %3 : vector<8x8x27xbf16> to vector<64x27xbf16>
    %c0_6 = arith.constant 0 : index
    %c0_7 = arith.constant 0 : index
    %5 = vector.load %arg2[%c0_6, %c0_7] : memref<27x8xbf16, #tpu.memory_space<vmem>>, vector<27x8xbf16>
    %cst_8 = arith.constant dense<0.000000e+00> : vector<64x8xf32>
    %6 = tpu.matmul %4, %5, %cst_8 {dimension_numbers = #tpu.dot_dimension_numbers<[1], [0], [0], [1], [0, 0, 1, 1], [], []>} : vector<64x27xbf16>, vector<27x8xbf16>, vector<64x8xf32> -> vector<64x8xf32>
    %c0_9 = arith.constant 0 : index
    %c0_10 = arith.constant 0 : index
    %7 = vector.load %arg3[%c0_9, %c0_10] : memref<1x8xf32, #tpu.memory_space<vmem>>, vector<1x8xf32>
    %8 = vector.broadcast %7 : vector<1x8xf32> to vector<64x8xf32>
    %9 = arith.addf %6, %8 : vector<64x8xf32>
    %cst_11 = arith.constant 0.000000e+00 : f32
    %10 = vector.broadcast %cst_11 : f32 to vector<64x8xf32>
    %11 = arith.maximumf %9, %10 : vector<64x8xf32>
    %12 = vector.shape_cast %11 : vector<64x8xf32> to vector<8x8x8xf32>
    %13 = tpu.concatenate %0, %12 in 0 : vector<1x8x8xf32>, vector<8x8x8xf32> -> vector<9x8x8xf32>
    %14 = tpu.concatenate %1, %13 in 1 : vector<9x1x8xf32>, vector<9x8x8xf32> -> vector<9x9x8xf32>
    %c0_12 = arith.constant 0 : index
    %c0_13 = arith.constant 0 : index
    %c1 = arith.constant 1 : index
    %c0_14 = arith.constant 0 : index
    %c0_15 = arith.constant 0 : index
    %c0_16 = arith.constant 0 : index
    %15 = vector.load %arg1[%c0_12, %c0_13, %c1, %c0_14, %c0_15, %c0_16] : memref<1x2x2x8x8x27xbf16, #tpu.memory_space<vmem>>, vector<1x1x1x8x8x27xbf16>
    %16 = vector.shape_cast %15 : vector<1x1x1x8x8x27xbf16> to vector<8x8x27xbf16>
    %17 = vector.shape_cast %16 : vector<8x8x27xbf16> to vector<64x27xbf16>
    %c0_17 = arith.constant 0 : index
    %c0_18 = arith.constant 0 : index
    %18 = vector.load %arg2[%c0_17, %c0_18] : memref<27x8xbf16, #tpu.memory_space<vmem>>, vector<27x8xbf16>
    %cst_19 = arith.constant dense<0.000000e+00> : vector<64x8xf32>
    %19 = tpu.matmul %17, %18, %cst_19 {dimension_numbers = #tpu.dot_dimension_numbers<[1], [0], [0], [1], [0, 0, 1, 1], [], []>} : vector<64x27xbf16>, vector<27x8xbf16>, vector<64x8xf32> -> vector<64x8xf32>
    %c0_20 = arith.constant 0 : index
    %c0_21 = arith.constant 0 : index
    %20 = vector.load %arg3[%c0_20, %c0_21] : memref<1x8xf32, #tpu.memory_space<vmem>>, vector<1x8xf32>
    %21 = vector.broadcast %20 : vector<1x8xf32> to vector<64x8xf32>
    %22 = arith.addf %19, %21 : vector<64x8xf32>
    %cst_22 = arith.constant 0.000000e+00 : f32
    %23 = vector.broadcast %cst_22 : f32 to vector<64x8xf32>
    %24 = arith.maximumf %22, %23 : vector<64x8xf32>
    %25 = vector.shape_cast %24 : vector<64x8xf32> to vector<8x8x8xf32>
    %26 = tpu.concatenate %0, %25 in 0 : vector<1x8x8xf32>, vector<8x8x8xf32> -> vector<9x8x8xf32>
    %27 = tpu.concatenate %1, %26 in 1 : vector<9x1x8xf32>, vector<9x8x8xf32> -> vector<9x9x8xf32>
    %c0_23 = arith.constant 0 : index
    %c1_24 = arith.constant 1 : index
    %c0_25 = arith.constant 0 : index
    %c0_26 = arith.constant 0 : index
    %c0_27 = arith.constant 0 : index
    %c0_28 = arith.constant 0 : index
    %28 = vector.load %arg1[%c0_23, %c1_24, %c0_25, %c0_26, %c0_27, %c0_28] : memref<1x2x2x8x8x27xbf16, #tpu.memory_space<vmem>>, vector<1x1x1x8x8x27xbf16>
    %29 = vector.shape_cast %28 : vector<1x1x1x8x8x27xbf16> to vector<8x8x27xbf16>
    %30 = vector.shape_cast %29 : vector<8x8x27xbf16> to vector<64x27xbf16>
    %c0_29 = arith.constant 0 : index
    %c0_30 = arith.constant 0 : index
    %31 = vector.load %arg2[%c0_29, %c0_30] : memref<27x8xbf16, #tpu.memory_space<vmem>>, vector<27x8xbf16>
    %cst_31 = arith.constant dense<0.000000e+00> : vector<64x8xf32>
    %32 = tpu.matmul %30, %31, %cst_31 {dimension_numbers = #tpu.dot_dimension_numbers<[1], [0], [0], [1], [0, 0, 1, 1], [], []>} : vector<64x27xbf16>, vector<27x8xbf16>, vector<64x8xf32> -> vector<64x8xf32>
    %c0_32 = arith.constant 0 : index
    %c0_33 = arith.constant 0 : index
    %33 = vector.load %arg3[%c0_32, %c0_33] : memref<1x8xf32, #tpu.memory_space<vmem>>, vector<1x8xf32>
    %34 = vector.broadcast %33 : vector<1x8xf32> to vector<64x8xf32>
    %35 = arith.addf %32, %34 : vector<64x8xf32>
    %cst_34 = arith.constant 0.000000e+00 : f32
    %36 = vector.broadcast %cst_34 : f32 to vector<64x8xf32>
    %37 = arith.maximumf %35, %36 : vector<64x8xf32>
    %38 = vector.shape_cast %37 : vector<64x8xf32> to vector<8x8x8xf32>
    %39 = tpu.concatenate %0, %38 in 0 : vector<1x8x8xf32>, vector<8x8x8xf32> -> vector<9x8x8xf32>
    %40 = tpu.concatenate %1, %39 in 1 : vector<9x1x8xf32>, vector<9x8x8xf32> -> vector<9x9x8xf32>
    %c0_35 = arith.constant 0 : index
    %c1_36 = arith.constant 1 : index
    %c1_37 = arith.constant 1 : index
    %c0_38 = arith.constant 0 : index
    %c0_39 = arith.constant 0 : index
    %c0_40 = arith.constant 0 : index
    %41 = vector.load %arg1[%c0_35, %c1_36, %c1_37, %c0_38, %c0_39, %c0_40] : memref<1x2x2x8x8x27xbf16, #tpu.memory_space<vmem>>, vector<1x1x1x8x8x27xbf16>
    %42 = vector.shape_cast %41 : vector<1x1x1x8x8x27xbf16> to vector<8x8x27xbf16>
    %43 = vector.shape_cast %42 : vector<8x8x27xbf16> to vector<64x27xbf16>
    %c0_41 = arith.constant 0 : index
    %c0_42 = arith.constant 0 : index
    %44 = vector.load %arg2[%c0_41, %c0_42] : memref<27x8xbf16, #tpu.memory_space<vmem>>, vector<27x8xbf16>
    %cst_43 = arith.constant dense<0.000000e+00> : vector<64x8xf32>
    %45 = tpu.matmul %43, %44, %cst_43 {dimension_numbers = #tpu.dot_dimension_numbers<[1], [0], [0], [1], [0, 0, 1, 1], [], []>} : vector<64x27xbf16>, vector<27x8xbf16>, vector<64x8xf32> -> vector<64x8xf32>
    %c0_44 = arith.constant 0 : index
    %c0_45 = arith.constant 0 : index
    %46 = vector.load %arg3[%c0_44, %c0_45] : memref<1x8xf32, #tpu.memory_space<vmem>>, vector<1x8xf32>
    %47 = vector.broadcast %46 : vector<1x8xf32> to vector<64x8xf32>
    %48 = arith.addf %45, %47 : vector<64x8xf32>
    %cst_46 = arith.constant 0.000000e+00 : f32
    %49 = vector.broadcast %cst_46 : f32 to vector<64x8xf32>
    %50 = arith.maximumf %48, %49 : vector<64x8xf32>
    %51 = vector.shape_cast %50 : vector<64x8xf32> to vector<8x8x8xf32>
    %52 = tpu.concatenate %0, %51 in 0 : vector<1x8x8xf32>, vector<8x8x8xf32> -> vector<9x8x8xf32>
    %53 = tpu.concatenate %1, %52 in 1 : vector<9x1x8xf32>, vector<9x8x8xf32> -> vector<9x9x8xf32>
    %54 = vector.extract_strided_slice %53 {offsets = [0, 0, 0], sizes = [8, 8, 8], strides = [1, 1, 1]} : vector<9x9x8xf32> to vector<8x8x8xf32>
    %55 = vector.shape_cast %54 : vector<8x8x8xf32> to vector<64x8xf32>
    %56 = vector.extract_strided_slice %40 {offsets = [0, 1, 0], sizes = [8, 8, 8], strides = [1, 1, 1]} : vector<9x9x8xf32> to vector<8x8x8xf32>
    %57 = vector.shape_cast %56 : vector<8x8x8xf32> to vector<64x8xf32>
    %58 = vector.extract_strided_slice %53 {offsets = [0, 1, 0], sizes = [8, 8, 8], strides = [1, 1, 1]} : vector<9x9x8xf32> to vector<8x8x8xf32>
    %59 = vector.shape_cast %58 : vector<8x8x8xf32> to vector<64x8xf32>
    %60 = vector.extract_strided_slice %27 {offsets = [1, 0, 0], sizes = [8, 8, 8], strides = [1, 1, 1]} : vector<9x9x8xf32> to vector<8x8x8xf32>
    %61 = vector.shape_cast %60 : vector<8x8x8xf32> to vector<64x8xf32>
    %62 = vector.extract_strided_slice %14 {offsets = [1, 1, 0], sizes = [8, 8, 8], strides = [1, 1, 1]} : vector<9x9x8xf32> to vector<8x8x8xf32>
    %63 = vector.shape_cast %62 : vector<8x8x8xf32> to vector<64x8xf32>
    %64 = vector.extract_strided_slice %27 {offsets = [1, 1, 0], sizes = [8, 8, 8], strides = [1, 1, 1]} : vector<9x9x8xf32> to vector<8x8x8xf32>
    %65 = vector.shape_cast %64 : vector<8x8x8xf32> to vector<64x8xf32>
    %66 = vector.extract_strided_slice %53 {offsets = [1, 0, 0], sizes = [8, 8, 8], strides = [1, 1, 1]} : vector<9x9x8xf32> to vector<8x8x8xf32>
    %67 = vector.shape_cast %66 : vector<8x8x8xf32> to vector<64x8xf32>
    %68 = vector.extract_strided_slice %40 {offsets = [1, 1, 0], sizes = [8, 8, 8], strides = [1, 1, 1]} : vector<9x9x8xf32> to vector<8x8x8xf32>
    %69 = vector.shape_cast %68 : vector<8x8x8xf32> to vector<64x8xf32>
    %70 = vector.extract_strided_slice %53 {offsets = [1, 1, 0], sizes = [8, 8, 8], strides = [1, 1, 1]} : vector<9x9x8xf32> to vector<8x8x8xf32>
    %71 = vector.shape_cast %70 : vector<8x8x8xf32> to vector<64x8xf32>
    %72 = tpu.concatenate %55, %57, %59, %61, %63, %65, %67, %69, %71 in 1 : vector<64x8xf32>, vector<64x8xf32>, vector<64x8xf32>, vector<64x8xf32>, vector<64x8xf32>, vector<64x8xf32>, vector<64x8xf32>, vector<64x8xf32>, vector<64x8xf32> -> vector<64x72xf32>
    %73 = arith.truncf %72 : vector<64x72xf32> to vector<64x72xbf16>
    %c0_47 = arith.constant 0 : index
    %c0_48 = arith.constant 0 : index
    %74 = vector.load %arg4[%c0_47, %c0_48] : memref<72x16xbf16, #tpu.memory_space<vmem>>, vector<72x16xbf16>
    %cst_49 = arith.constant dense<0.000000e+00> : vector<64x16xf32>
    %75 = tpu.matmul %73, %74, %cst_49 {dimension_numbers = #tpu.dot_dimension_numbers<[1], [0], [0], [1], [0, 0, 1, 1], [], []>} : vector<64x72xbf16>, vector<72x16xbf16>, vector<64x16xf32> -> vector<64x16xf32>
    %c0_50 = arith.constant 0 : index
    %c0_51 = arith.constant 0 : index
    %76 = vector.load %arg5[%c0_50, %c0_51] : memref<1x16xf32, #tpu.memory_space<vmem>>, vector<1x16xf32>
    %77 = vector.broadcast %76 : vector<1x16xf32> to vector<64x16xf32>
    %78 = arith.addf %75, %77 : vector<64x16xf32>
    %cst_52 = arith.constant 0.000000e+00 : f32
    %79 = vector.broadcast %cst_52 : f32 to vector<64x16xf32>
    %80 = arith.maximumf %78, %79 : vector<64x16xf32>
    %cst_53 = arith.constant 0.000000e+00 : f32
    %81 = vector.broadcast %cst_53 : f32 to vector<1x8x16xf32>
    %cst_54 = arith.constant 0.000000e+00 : f32
    %82 = vector.broadcast %cst_54 : f32 to vector<10x1x16xf32>
    %83 = vector.shape_cast %80 : vector<64x16xf32> to vector<8x8x16xf32>
    %84 = tpu.concatenate %81, %83, %81 in 0 : vector<1x8x16xf32>, vector<8x8x16xf32>, vector<1x8x16xf32> -> vector<10x8x16xf32>
    %85 = tpu.concatenate %82, %84, %82 in 1 : vector<10x1x16xf32>, vector<10x8x16xf32>, vector<10x1x16xf32> -> vector<10x10x16xf32>
    %86 = vector.extract_strided_slice %85 {offsets = [0, 0, 0], sizes = [8, 8, 16], strides = [1, 1, 1]} : vector<10x10x16xf32> to vector<8x8x16xf32>
    %87 = vector.shape_cast %86 : vector<8x8x16xf32> to vector<64x16xf32>
    %88 = vector.extract_strided_slice %85 {offsets = [0, 1, 0], sizes = [8, 8, 16], strides = [1, 1, 1]} : vector<10x10x16xf32> to vector<8x8x16xf32>
    %89 = vector.shape_cast %88 : vector<8x8x16xf32> to vector<64x16xf32>
    %90 = vector.extract_strided_slice %85 {offsets = [0, 2, 0], sizes = [8, 8, 16], strides = [1, 1, 1]} : vector<10x10x16xf32> to vector<8x8x16xf32>
    %91 = vector.shape_cast %90 : vector<8x8x16xf32> to vector<64x16xf32>
    %92 = vector.extract_strided_slice %85 {offsets = [1, 0, 0], sizes = [8, 8, 16], strides = [1, 1, 1]} : vector<10x10x16xf32> to vector<8x8x16xf32>
    %93 = vector.shape_cast %92 : vector<8x8x16xf32> to vector<64x16xf32>
    %94 = vector.extract_strided_slice %85 {offsets = [1, 1, 0], sizes = [8, 8, 16], strides = [1, 1, 1]} : vector<10x10x16xf32> to vector<8x8x16xf32>
    %95 = vector.shape_cast %94 : vector<8x8x16xf32> to vector<64x16xf32>
    %96 = vector.extract_strided_slice %85 {offsets = [1, 2, 0], sizes = [8, 8, 16], strides = [1, 1, 1]} : vector<10x10x16xf32> to vector<8x8x16xf32>
    %97 = vector.shape_cast %96 : vector<8x8x16xf32> to vector<64x16xf32>
    %98 = vector.extract_strided_slice %85 {offsets = [2, 0, 0], sizes = [8, 8, 16], strides = [1, 1, 1]} : vector<10x10x16xf32> to vector<8x8x16xf32>
    %99 = vector.shape_cast %98 : vector<8x8x16xf32> to vector<64x16xf32>
    %100 = vector.extract_strided_slice %85 {offsets = [2, 1, 0], sizes = [8, 8, 16], strides = [1, 1, 1]} : vector<10x10x16xf32> to vector<8x8x16xf32>
    %101 = vector.shape_cast %100 : vector<8x8x16xf32> to vector<64x16xf32>
    %102 = vector.extract_strided_slice %85 {offsets = [2, 2, 0], sizes = [8, 8, 16], strides = [1, 1, 1]} : vector<10x10x16xf32> to vector<8x8x16xf32>
    %103 = vector.shape_cast %102 : vector<8x8x16xf32> to vector<64x16xf32>
    %104 = tpu.concatenate %87, %89, %91, %93, %95, %97, %99, %101, %103 in 1 : vector<64x16xf32>, vector<64x16xf32>, vector<64x16xf32>, vector<64x16xf32>, vector<64x16xf32>, vector<64x16xf32>, vector<64x16xf32>, vector<64x16xf32>, vector<64x16xf32> -> vector<64x144xf32>
    %105 = arith.truncf %104 : vector<64x144xf32> to vector<64x144xbf16>
    %c0_55 = arith.constant 0 : index
    %c0_56 = arith.constant 0 : index
    %106 = vector.load %arg6[%c0_55, %c0_56] : memref<144x32xbf16, #tpu.memory_space<vmem>>, vector<144x32xbf16>
    %cst_57 = arith.constant dense<0.000000e+00> : vector<64x32xf32>
    %107 = tpu.matmul %105, %106, %cst_57 {dimension_numbers = #tpu.dot_dimension_numbers<[1], [0], [0], [1], [0, 0, 1, 1], [], []>} : vector<64x144xbf16>, vector<144x32xbf16>, vector<64x32xf32> -> vector<64x32xf32>
    %c0_58 = arith.constant 0 : index
    %c0_59 = arith.constant 0 : index
    %108 = vector.load %arg7[%c0_58, %c0_59] : memref<1x32xf32, #tpu.memory_space<vmem>>, vector<1x32xf32>
    %109 = vector.broadcast %108 : vector<1x32xf32> to vector<64x32xf32>
    %110 = arith.addf %107, %109 : vector<64x32xf32>
    %cst_60 = arith.constant 0.000000e+00 : f32
    %111 = vector.broadcast %cst_60 : f32 to vector<64x32xf32>
    %112 = arith.maximumf %110, %111 : vector<64x32xf32>
    %cst_61 = arith.constant dense<0.000000e+00> : vector<32xf32>
    %113 = vector.multi_reduction <add>, %112, %cst_61 [0] : vector<64x32xf32> to vector<32xf32>
    %114 = vector.shape_cast %113 : vector<32xf32> to vector<1x32xf32>
    %cst_62 = arith.constant 1.562500e-02 : f32
    %115 = vector.broadcast %cst_62 : f32 to vector<1x32xf32>
    %116 = arith.mulf %114, %115 : vector<1x32xf32>
    %c0_63 = arith.constant 0 : index
    %c0_64 = arith.constant 0 : index
    %117 = vector.load %arg8[%c0_63, %c0_64] : memref<32x10xf32, #tpu.memory_space<vmem>>, vector<32x10xf32>
    %cst_65 = arith.constant dense<0.000000e+00> : vector<1x10xf32>
    %118 = tpu.matmul %116, %117, %cst_65 {dimension_numbers = #tpu.dot_dimension_numbers<[1], [0], [0], [1], [0, 0, 1, 1], [], []>} : vector<1x32xf32>, vector<32x10xf32>, vector<1x10xf32> -> vector<1x10xf32>
    %c0_66 = arith.constant 0 : index
    %c0_67 = arith.constant 0 : index
    %119 = vector.load %arg9[%c0_66, %c0_67] : memref<1x10xf32, #tpu.memory_space<vmem>>, vector<1x10xf32>
    %120 = arith.addf %118, %119 : vector<1x10xf32>
    %c0_68 = arith.constant 0 : index
    %c0_69 = arith.constant 0 : index
    %c0_70 = arith.constant 0 : index
    %121 = vector.load %arg14[%c0_68, %c0_69, %c0_70] : memref<1x1x10xf32, #tpu.memory_space<vmem>>, vector<1x1x10xf32>
    %122 = vector.shape_cast %121 : vector<1x1x10xf32> to vector<1x10xf32>
    %123 = vector.shape_cast %120 : vector<1x10xf32> to vector<1x1x10xf32>
    tpu.vector_store %arg14[%c0_68, %c0_69, %c0_70], %123 {strides = array<i32>} : memref<1x1x10xf32, #tpu.memory_space<vmem>>, vector<1x1x10xf32>,
    %cst_71 = arith.constant dense<0xFF800000> : vector<1xf32>
    %124 = vector.multi_reduction <maximumf>, %120, %cst_71 [1] : vector<1x10xf32> to vector<1xf32>
    %125 = vector.shape_cast %124 : vector<1xf32> to vector<1x1xf32>
    %126 = tpu.iota {dimensions = array<i32: 1>} : vector<1x10xi32>
    %127 = vector.broadcast %125 : vector<1x1xf32> to vector<1x10xf32>
    %128 = arith.cmpf oeq, %120, %127 : vector<1x10xf32>
    %c10_i32 = arith.constant 10 : i32
    %129 = vector.broadcast %c10_i32 : i32 to vector<1x10xi32>
    %130 = arith.select %128, %126, %129 : vector<1x10xi1>, vector<1x10xi32>
    %cst_72 = arith.constant dense<2147483647> : vector<1xi32>
    %131 = vector.multi_reduction <minsi>, %130, %cst_72 [1] : vector<1x10xi32> to vector<1xi32>
    %132 = vector.shape_cast %131 : vector<1xi32> to vector<1x1xi32>
    %c0_73 = arith.constant 0 : index
    %c0_74 = arith.constant 0 : index
    %c0_75 = arith.constant 0 : index
    %133 = vector.load %arg15[%c0_73, %c0_74, %c0_75] : memref<1x1x1xi32, #tpu.memory_space<vmem>>, vector<1x1x1xi32>
    %134 = vector.shape_cast %133 : vector<1x1x1xi32> to vector<1x1xi32>
    %135 = vector.shape_cast %132 : vector<1x1xi32> to vector<1x1x1xi32>
    tpu.vector_store %arg15[%c0_73, %c0_74, %c0_75], %135 {strides = array<i32>} : memref<1x1x1xi32, #tpu.memory_space<vmem>>, vector<1x1x1xi32>,
    %136 = tpu.concatenate %80, %112 in 1 : vector<64x16xf32>, vector<64x32xf32> -> vector<64x48xf32>
    %137 = arith.truncf %136 : vector<64x48xf32> to vector<64x48xbf16>
    %c0_76 = arith.constant 0 : index
    %c0_77 = arith.constant 0 : index
    %138 = vector.load %arg10[%c0_76, %c0_77] : memref<48x32xbf16, #tpu.memory_space<vmem>>, vector<48x32xbf16>
    %cst_78 = arith.constant dense<0.000000e+00> : vector<64x32xf32>
    %139 = tpu.matmul %137, %138, %cst_78 {dimension_numbers = #tpu.dot_dimension_numbers<[1], [0], [0], [1], [0, 0, 1, 1], [], []>} : vector<64x48xbf16>, vector<48x32xbf16>, vector<64x32xf32> -> vector<64x32xf32>
    %c0_79 = arith.constant 0 : index
    %c0_80 = arith.constant 0 : index
    %140 = vector.load %arg11[%c0_79, %c0_80] : memref<1x32xf32, #tpu.memory_space<vmem>>, vector<1x32xf32>
    %141 = vector.broadcast %140 : vector<1x32xf32> to vector<64x32xf32>
    %142 = arith.addf %139, %141 : vector<64x32xf32>
    %cst_81 = arith.constant 0.000000e+00 : f32
    %143 = vector.broadcast %cst_81 : f32 to vector<64x32xf32>
    %144 = arith.maximumf %142, %143 : vector<64x32xf32>
    %145 = arith.truncf %144 : vector<64x32xf32> to vector<64x32xbf16>
    %c0_82 = arith.constant 0 : index
    %c0_83 = arith.constant 0 : index
    %146 = vector.load %arg12[%c0_82, %c0_83] : memref<32x128xbf16, #tpu.memory_space<vmem>>, vector<32x128xbf16>
    %cst_84 = arith.constant dense<0.000000e+00> : vector<64x128xf32>
    %147 = tpu.matmul %145, %146, %cst_84 {dimension_numbers = #tpu.dot_dimension_numbers<[1], [0], [0], [1], [0, 0, 1, 1], [], []>} : vector<64x32xbf16>, vector<32x128xbf16>, vector<64x128xf32> -> vector<64x128xf32>
    %c0_85 = arith.constant 0 : index
    %c0_86 = arith.constant 0 : index
    %148 = vector.load %arg13[%c0_85, %c0_86] : memref<1x128xf32, #tpu.memory_space<vmem>>, vector<1x128xf32>
    %149 = vector.broadcast %148 : vector<1x128xf32> to vector<64x128xf32>
    %150 = arith.addf %147, %149 : vector<64x128xf32>
    %151 = tpu.iota {dimensions = array<i32: 1>} : vector<64x128xi32>
    %c10_i32_87 = arith.constant 10 : i32
    %152 = vector.broadcast %c10_i32_87 : i32 to vector<64x128xi32>
    %153 = arith.cmpi sge, %151, %152 : vector<64x128xi32>
    %c20_i32 = arith.constant 20 : i32
    %154 = vector.broadcast %c20_i32 : i32 to vector<64x128xi32>
    %155 = arith.cmpi slt, %151, %154 : vector<64x128xi32>
    %156 = arith.andi %153, %155 : vector<64x128xi1>
    %157 = arith.negf %150 : vector<64x128xf32>
    %158 = math.exp %157 : vector<64x128xf32>
    %cst_88 = arith.constant 1.000000e+00 : f32
    %159 = vector.broadcast %cst_88 : f32 to vector<64x128xf32>
    %160 = arith.addf %159, %158 : vector<64x128xf32>
    %161 = arith.divf %159, %160 : vector<64x128xf32>
    %162 = arith.select %156, %161, %150 : vector<64x128xi1>, vector<64x128xf32>
    %163 = arith.truncf %162 : vector<64x128xf32> to vector<64x128xbf16>
    %c0_89 = arith.constant 0 : index
    %c0_90 = arith.constant 0 : index
    %c0_91 = arith.constant 0 : index
    %164 = vector.load %arg16[%c0_89, %c0_90, %c0_91] : memref<1x64x128xbf16, #tpu.memory_space<vmem>>, vector<1x64x128xbf16>
    %165 = vector.shape_cast %164 : vector<1x64x128xbf16> to vector<64x128xbf16>
    %166 = vector.shape_cast %163 : vector<64x128xbf16> to vector<1x64x128xbf16>
    tpu.vector_store %arg16[%c0_89, %c0_90, %c0_91], %166 {strides = array<i32>} : memref<1x64x128xbf16, #tpu.memory_space<vmem>>, vector<1x64x128xbf16>,
    return
  }
  func.func @transform_0(%arg0: i32) -> (i32, i32, i32, i32, i32, i32) {
    %c0_i32 = arith.constant 0 : i32
    %c0_i32_0 = arith.constant 0 : i32
    %c0_i32_1 = arith.constant 0 : i32
    %c0_i32_2 = arith.constant 0 : i32
    %c0_i32_3 = arith.constant 0 : i32
    %c0_i32_4 = arith.constant 0 : i32
    return %arg0, %c0_i32, %c0_i32_0, %c0_i32_1, %c0_i32_2, %c0_i32_3 : i32, i32, i32, i32, i32, i32
  }
  func.func @transform_1(%arg0: i32) -> (i32, i32) {
    %c0_i32 = arith.constant 0 : i32
    %c0_i32_0 = arith.constant 0 : i32
    %c0_i32_1 = arith.constant 0 : i32
    return %c0_i32, %c0_i32_0 : i32, i32
  }
  func.func @transform_2(%arg0: i32) -> (i32, i32) {
    %c0_i32 = arith.constant 0 : i32
    %c0_i32_0 = arith.constant 0 : i32
    %c0_i32_1 = arith.constant 0 : i32
    return %c0_i32, %c0_i32_0 : i32, i32
  }
  func.func @transform_3(%arg0: i32) -> (i32, i32) {
    %c0_i32 = arith.constant 0 : i32
    %c0_i32_0 = arith.constant 0 : i32
    %c0_i32_1 = arith.constant 0 : i32
    return %c0_i32, %c0_i32_0 : i32, i32
  }
  func.func @transform_4(%arg0: i32) -> (i32, i32) {
    %c0_i32 = arith.constant 0 : i32
    %c0_i32_0 = arith.constant 0 : i32
    %c0_i32_1 = arith.constant 0 : i32
    return %c0_i32, %c0_i32_0 : i32, i32
  }
  func.func @transform_5(%arg0: i32) -> (i32, i32) {
    %c0_i32 = arith.constant 0 : i32
    %c0_i32_0 = arith.constant 0 : i32
    %c0_i32_1 = arith.constant 0 : i32
    return %c0_i32, %c0_i32_0 : i32, i32
  }
  func.func @transform_6(%arg0: i32) -> (i32, i32) {
    %c0_i32 = arith.constant 0 : i32
    %c0_i32_0 = arith.constant 0 : i32
    %c0_i32_1 = arith.constant 0 : i32
    return %c0_i32, %c0_i32_0 : i32, i32
  }
  func.func @transform_7(%arg0: i32) -> (i32, i32) {
    %c0_i32 = arith.constant 0 : i32
    %c0_i32_0 = arith.constant 0 : i32
    %c0_i32_1 = arith.constant 0 : i32
    return %c0_i32, %c0_i32_0 : i32, i32
  }
  func.func @transform_8(%arg0: i32) -> (i32, i32) {
    %c0_i32 = arith.constant 0 : i32
    %c0_i32_0 = arith.constant 0 : i32
    %c0_i32_1 = arith.constant 0 : i32
    return %c0_i32, %c0_i32_0 : i32, i32
  }
  func.func @transform_9(%arg0: i32) -> (i32, i32) {
    %c0_i32 = arith.constant 0 : i32
    %c0_i32_0 = arith.constant 0 : i32
    %c0_i32_1 = arith.constant 0 : i32
    return %c0_i32, %c0_i32_0 : i32, i32
  }
  func.func @transform_10(%arg0: i32) -> (i32, i32) {
    %c0_i32 = arith.constant 0 : i32
    %c0_i32_0 = arith.constant 0 : i32
    %c0_i32_1 = arith.constant 0 : i32
    return %c0_i32, %c0_i32_0 : i32, i32
  }
  func.func @transform_11(%arg0: i32) -> (i32, i32) {
    %c0_i32 = arith.constant 0 : i32
    %c0_i32_0 = arith.constant 0 : i32
    %c0_i32_1 = arith.constant 0 : i32
    return %c0_i32, %c0_i32_0 : i32, i32
  }
  func.func @transform_12(%arg0: i32) -> (i32, i32) {
    %c0_i32 = arith.constant 0 : i32
    %c0_i32_0 = arith.constant 0 : i32
    %c0_i32_1 = arith.constant 0 : i32
    return %c0_i32, %c0_i32_0 : i32, i32
  }
  func.func @transform_13(%arg0: i32) -> (i32, i32, i32) {
    %c0_i32 = arith.constant 0 : i32
    %c0_i32_0 = arith.constant 0 : i32
    %c0_i32_1 = arith.constant 0 : i32
    return %arg0, %c0_i32, %c0_i32_0 : i32, i32, i32
  }
  func.func @transform_14(%arg0: i32) -> (i32, i32, i32) {
    %c0_i32 = arith.constant 0 : i32
    %c0_i32_0 = arith.constant 0 : i32
    %c0_i32_1 = arith.constant 0 : i32
    return %arg0, %c0_i32, %c0_i32_0 : i32, i32, i32
  }
  func.func @transform_15(%arg0: i32) -> (i32, i32, i32) {
    %c0_i32 = arith.constant 0 : i32
    %c0_i32_0 = arith.constant 0 : i32
    %c0_i32_1 = arith.constant 0 : i32
    return %arg0, %c0_i32, %c0_i32_0 : i32, i32, i32
  }
}

</mosaic_0001>

<llo_original>
// kernel: generic_forward.1
$region0: #{generic_forward.1}
  #allocation0 [shape = 'u32[]', space=smem, size = 0x4, offset = 0x4, fixed_abs, tag = 'smem constant byte address 0x4 - core index']
  #allocation1 [shape = 'u32[144,128]{1,0:T(1,128)}', space=vmem, size = 0x12000, scoped, tag = 'internal scratch']
  %s0 = inlined_call_operand.vmem [shape: bf16[2,2,2,8,8,27], index: 0, kind: input, shape index: {}]
  %s1 = inlined_call_operand.vmem [shape: bf16[27,8], index: 1, kind: input, shape index: {}]
  %s2 = inlined_call_operand.vmem [shape: f32[1,8], index: 2, kind: input, shape index: {}]
  %s3 = inlined_call_operand.vmem [shape: bf16[72,16], index: 3, kind: input, shape index: {}]
  %s4 = inlined_call_operand.vmem [shape: f32[1,16], index: 4, kind: input, shape index: {}]
  %s5 = inlined_call_operand.vmem [shape: bf16[144,32], index: 5, kind: input, shape index: {}]
  %s6 = inlined_call_operand.vmem [shape: f32[1,32], index: 6, kind: input, shape index: {}]
  %s7 = inlined_call_operand.vmem [shape: f32[32,10], index: 7, kind: input, shape index: {}]
  %s8 = inlined_call_operand.vmem [shape: f32[1,10], index: 8, kind: input, shape index: {}]
  %s9 = inlined_call_operand.vmem [shape: bf16[48,32], index: 9, kind: input, shape index: {}]
  %s10 = inlined_call_operand.vmem [shape: f32[1,32], index: 10, kind: input, shape index: {}]
  %s11 = inlined_call_operand.vmem [shape: bf16[32,128], index: 11, kind: input, shape index: {}]
  %s12 = inlined_call_operand.vmem [shape: f32[1,128], index: 12, kind: input, shape index: {}]
  %s13 = inlined_call_operand.hbm [shape: f32[2,1,10], index: 13, kind: output, shape index: {0}]
  %s14 = inlined_call_operand.vmem [shape: s32[2,1,1], index: 14, kind: output, shape index: {1}]
  %s15 = inlined_call_operand.vmem [shape: bf16[2,64,128], index: 15, kind: output, shape index: {2}]
  %16 = xla_tuple %s13, %s14, %s15
  %s17 = sld [smem:[#allocation0]]
  $region101: #{generic_forward.1} parent=0
    _
  %s19 = ssub.s32 1, %s17
  %s20 = scalar_select 0, %s19, %s17
  $region1: #{generic_forward.1} parent=0
    #allocation2 [shape = 'u8[1024]{0}', space=vmem, size = 0x400, scoped, tag = 'output window, operand 0']
    #allocation3 [shape = 's32[2]{0}', space=sflag, size = 0x8, scoped, tag = 'scoped memory for generic_forward.1']
    %21 = vsyncpa [#allocation3], 0
    %s22 = scalar_lea.sflag [#allocation3], 1
    %23 = vsyncpa %s22, 0
    loop: start=0, step=1, limit=4
    $region2: #{generic_forward.1} parent=1 // loop_pre_header
      _
    $region3: #{generic_forward.1} parent=1 // loop_header
      %s25 = sphi 0, %s29
      %p26 = scmp.ge.s32.totalorder %s25, 4
      %s35 = sphi 0, %s37
      %s38 = sphi 0, %s35
      %s39 = sphi 0, %s38
      %s55 = sphi 0, %s39
      %s59 = sphi 0, %s59
      %s61 = sphi 0, %s59
      %s62 = sphi 0, %s61
      %s76 = sphi 0, %s62
      %s80 = sphi 0, %s80
      %s82 = sphi 0, %s80
      %s83 = sphi 0, %s82
      %s97 = sphi 0, %s83
      %s101 = sphi 0, %s101
      %s103 = sphi 0, %s101
      %s104 = sphi 0, %s103
      %s118 = sphi 0, %s104
      %s122 = sphi 0, %s122
      %s124 = sphi 0, %s122
      %s125 = sphi 0, %s124
      %s139 = sphi 0, %s125
      %s143 = sphi 0, %s143
      %s145 = sphi 0, %s143
      %s146 = sphi 0, %s145
      %s160 = sphi 0, %s146
      %s164 = sphi 0, %s164
      %s166 = sphi 0, %s164
      %s167 = sphi 0, %s166
      %s181 = sphi 0, %s167
      %s185 = sphi 0, %s185
      %s187 = sphi 0, %s185
      %s188 = sphi 0, %s187
      %s202 = sphi 0, %s188
      %s206 = sphi 0, %s206
      %s208 = sphi 0, %s206
      %s209 = sphi 0, %s208
      %s223 = sphi 0, %s209
      %s227 = sphi 0, %s227
      %s229 = sphi 0, %s227
      %s230 = sphi 0, %s229
      %s244 = sphi 0, %s230
      %s248 = sphi 0, %s248
      %s250 = sphi 0, %s248
      %s251 = sphi 0, %s250
      %s265 = sphi 0, %s251
      %s269 = sphi 0, %s269
      %s271 = sphi 0, %s269
      %s272 = sphi 0, %s271
      %s286 = sphi 0, %s272
      %s290 = sphi 0, %s290
      %s292 = sphi 0, %s290
      %s293 = sphi 0, %s292
      %s307 = sphi 0, %s293
      %s313 = sphi 0, %s315
      %s316 = sphi 0, %s313
      %s317 = sphi 0, %s316
      %s333 = sphi 0, %s317
      %s339 = sphi 0, %s341
      %s342 = sphi 0, %s339
      %s343 = sphi 0, %s342
      %s359 = sphi 0, %s343
      %s365 = sphi 0, %s367
      %s368 = sphi 0, %s365
      %s369 = sphi 0, %s368
      %s385 = sphi 0, %s369
    $region4: #{generic_forward.1} parent=1 // loop_header_branch
      %28 = sbr.rel (%p26) target = $region8
    $region5: #{generic_forward.1} parent=1 // loop_body
      %s30 = ssub.s32 %s25, 1
      %s31 = ssub.s32 %s25, 2
      %s32 = sadd.s32 %s25, 1
      %s33 = ssub.s32 %s25, %s32
      %p34 = scmp.eq.s32.totalorder %s33, 0
      %s36 = sadd.s32 %s35, 1
      %s37 = scalar_select %p34, %s35, %s36
      %p40 = pneg %p34
      %p41 = scmp.eq.s32.totalorder %s25, 1
      %p42 = por %p40, %p41
      %p43 = scmp.ne.s32.totalorder %s35, %s38
      %p44 = scmp.eq.s32.totalorder %s25, 0
      %p45 = por %p43, %p44
      %p46 = scmp.ne.s32.totalorder %s35, %s38
      %p47 = scmp.eq.s32.totalorder %s30, 1
      %p48 = por %p46, %p47
      %p49 = scmp.ne.s32.totalorder %s38, %s39
      %p50 = scmp.eq.s32.totalorder %s30, 0
      %p51 = por %p49, %p50
      %p52 = scmp.ne.s32.totalorder %s38, %s39
      %p53 = scmp.eq.s32.totalorder %s31, 1
      %p54 = por %p52, %p53
      %p56 = scmp.ne.s32.totalorder %s39, %s55
      %p57 = scmp.eq.s32.totalorder %s31, 0
      %p58 = por %p56, %p57
      %s60 = sadd.s32 %s59, 1
      %p63 = scmp.eq.s32.totalorder %s25, 1
      %p64 = scmp.ne.s32.totalorder %s59, %s61
      %p65 = scmp.eq.s32.totalorder %s25, 0
      %p66 = por %p64, %p65
      %p67 = scmp.ne.s32.totalorder %s59, %s61
      %p68 = scmp.eq.s32.totalorder %s30, 1
      %p69 = por %p67, %p68
      %p70 = scmp.ne.s32.totalorder %s61, %s62
      %p71 = scmp.eq.s32.totalorder %s30, 0
      %p72 = por %p70, %p71
      %p73 = scmp.ne.s32.totalorder %s61, %s62
      %p74 = scmp.eq.s32.totalorder %s31, 1
      %p75 = por %p73, %p74
      %p77 = scmp.ne.s32.totalorder %s62, %s76
      %p78 = scmp.eq.s32.totalorder %s31, 0
      %p79 = por %p77, %p78
      %s81 = sadd.s32 %s80, 1
      %p84 = scmp.eq.s32.totalorder %s25, 1
      %p85 = scmp.ne.s32.totalorder %s80, %s82
      %p86 = scmp.eq.s32.totalorder %s25, 0
      %p87 = por %p85, %p86
      %p88 = scmp.ne.s32.totalorder %s80, %s82
      %p89 = scmp.eq.s32.totalorder %s30, 1
      %p90 = por %p88, %p89
      %p91 = scmp.ne.s32.totalorder %s82, %s83
      %p92 = scmp.eq.s32.totalorder %s30, 0
      %p93 = por %p91, %p92
      %p94 = scmp.ne.s32.totalorder %s82, %s83
      %p95 = scmp.eq.s32.totalorder %s31, 1
      %p96 = por %p94, %p95
      %p98 = scmp.ne.s32.totalorder %s83, %s97
      %p99 = scmp.eq.s32.totalorder %s31, 0
      %p100 = por %p98, %p99
      %s102 = sadd.s32 %s101, 1
      %p105 = scmp.eq.s32.totalorder %s25, 1
      %p106 = scmp.ne.s32.totalorder %s101, %s103
      %p107 = scmp.eq.s32.totalorder %s25, 0
      %p108 = por %p106, %p107
      %p109 = scmp.ne.s32.totalorder %s101, %s103
      %p110 = scmp.eq.s32.totalorder %s30, 1
      %p111 = por %p109, %p110
      %p112 = scmp.ne.s32.totalorder %s103, %s104
      %p113 = scmp.eq.s32.totalorder %s30, 0
      %p114 = por %p112, %p113
      %p115 = scmp.ne.s32.totalorder %s103, %s104
      %p116 = scmp.eq.s32.totalorder %s31, 1
      %p117 = por %p115, %p116
      %p119 = scmp.ne.s32.totalorder %s104, %s118
      %p120 = scmp.eq.s32.totalorder %s31, 0
      %p121 = por %p119, %p120
      %s123 = sadd.s32 %s122, 1
      %p126 = scmp.eq.s32.totalorder %s25, 1
      %p127 = scmp.ne.s32.totalorder %s122, %s124
      %p128 = scmp.eq.s32.totalorder %s25, 0
      %p129 = por %p127, %p128
      %p130 = scmp.ne.s32.totalorder %s122, %s124
      %p131 = scmp.eq.s32.totalorder %s30, 1
      %p132 = por %p130, %p131
      %p133 = scmp.ne.s32.totalorder %s124, %s125
      %p134 = scmp.eq.s32.totalorder %s30, 0
      %p135 = por %p133, %p134
      %p136 = scmp.ne.s32.totalorder %s124, %s125
      %p137 = scmp.eq.s32.totalorder %s31, 1
      %p138 = por %p136, %p137
      %p140 = scmp.ne.s32.totalorder %s125, %s139
      %p141 = scmp.eq.s32.totalorder %s31, 0
      %p142 = por %p140, %p141
      %s144 = sadd.s32 %s143, 1
      %p147 = scmp.eq.s32.totalorder %s25, 1
      %p148 = scmp.ne.s32.totalorder %s143, %s145
      %p149 = scmp.eq.s32.totalorder %s25, 0
      %p150 = por %p148, %p149
      %p151 = scmp.ne.s32.totalorder %s143, %s145
      %p152 = scmp.eq.s32.totalorder %s30, 1
      %p153 = por %p151, %p152
      %p154 = scmp.ne.s32.totalorder %s145, %s146
      %p155 = scmp.eq.s32.totalorder %s30, 0
      %p156 = por %p154, %p155
      %p157 = scmp.ne.s32.totalorder %s145, %s146
      %p158 = scmp.eq.s32.totalorder %s31, 1
      %p159 = por %p157, %p158
      %p161 = scmp.ne.s32.totalorder %s146, %s160
      %p162 = scmp.eq.s32.totalorder %s31, 0
      %p163 = por %p161, %p162
      %s165 = sadd.s32 %s164, 1
      %p168 = scmp.eq.s32.totalorder %s25, 1
      %p169 = scmp.ne.s32.totalorder %s164, %s166
      %p170 = scmp.eq.s32.totalorder %s25, 0
      %p171 = por %p169, %p170
      %p172 = scmp.ne.s32.totalorder %s164, %s166
      %p173 = scmp.eq.s32.totalorder %s30, 1
      %p174 = por %p172, %p173
      %p175 = scmp.ne.s32.totalorder %s166, %s167
      %p176 = scmp.eq.s32.totalorder %s30, 0
      %p177 = por %p175, %p176
      %p178 = scmp.ne.s32.totalorder %s166, %s167
      %p179 = scmp.eq.s32.totalorder %s31, 1
      %p180 = por %p178, %p179
      %p182 = scmp.ne.s32.totalorder %s167, %s181
      %p183 = scmp.eq.s32.totalorder %s31, 0
      %p184 = por %p182, %p183
      %s186 = sadd.s32 %s185, 1
      %p189 = scmp.eq.s32.totalorder %s25, 1
      %p190 = scmp.ne.s32.totalorder %s185, %s187
      %p191 = scmp.eq.s32.totalorder %s25, 0
      %p192 = por %p190, %p191
      %p193 = scmp.ne.s32.totalorder %s185, %s187
      %p194 = scmp.eq.s32.totalorder %s30, 1
      %p195 = por %p193, %p194
      %p196 = scmp.ne.s32.totalorder %s187, %s188
      %p197 = scmp.eq.s32.totalorder %s30, 0
      %p198 = por %p196, %p197
      %p199 = scmp.ne.s32.totalorder %s187, %s188
      %p200 = scmp.eq.s32.totalorder %s31, 1
      %p201 = por %p199, %p200
      %p203 = scmp.ne.s32.totalorder %s188, %s202
      %p204 = scmp.eq.s32.totalorder %s31, 0
      %p205 = por %p203, %p204
      %s207 = sadd.s32 %s206, 1
      %p210 = scmp.eq.s32.totalorder %s25, 1
      %p211 = scmp.ne.s32.totalorder %s206, %s208
      %p212 = scmp.eq.s32.totalorder %s25, 0
      %p213 = por %p211, %p212
      %p214 = scmp.ne.s32.totalorder %s206, %s208
      %p215 = scmp.eq.s32.totalorder %s30, 1
      %p216 = por %p214, %p215
      %p217 = scmp.ne.s32.totalorder %s208, %s209
      %p218 = scmp.eq.s32.totalorder %s30, 0
      %p219 = por %p217, %p218
      %p220 = scmp.ne.s32.totalorder %s208, %s209
      %p221 = scmp.eq.s32.totalorder %s31, 1
      %p222 = por %p220, %p221
      %p224 = scmp.ne.s32.totalorder %s209, %s223
      %p225 = scmp.eq.s32.totalorder %s31, 0
      %p226 = por %p224, %p225
      %s228 = sadd.s32 %s227, 1
      %p231 = scmp.eq.s32.totalorder %s25, 1
      %p232 = scmp.ne.s32.totalorder %s227, %s229
      %p233 = scmp.eq.s32.totalorder %s25, 0
      %p234 = por %p232, %p233
      %p235 = scmp.ne.s32.totalorder %s227, %s229
      %p236 = scmp.eq.s32.totalorder %s30, 1
      %p237 = por %p235, %p236
      %p238 = scmp.ne.s32.totalorder %s229, %s230
      %p239 = scmp.eq.s32.totalorder %s30, 0
      %p240 = por %p238, %p239
      %p241 = scmp.ne.s32.totalorder %s229, %s230
      %p242 = scmp.eq.s32.totalorder %s31, 1
      %p243 = por %p241, %p242
      %p245 = scmp.ne.s32.totalorder %s230, %s244
      %p246 = scmp.eq.s32.totalorder %s31, 0
      %p247 = por %p245, %p246
      %s249 = sadd.s32 %s248, 1
      %p252 = scmp.eq.s32.totalorder %s25, 1
      %p253 = scmp.ne.s32.totalorder %s248, %s250
      %p254 = scmp.eq.s32.totalorder %s25, 0
      %p255 = por %p253, %p254
      %p256 = scmp.ne.s32.totalorder %s248, %s250
      %p257 = scmp.eq.s32.totalorder %s30, 1
      %p258 = por %p256, %p257
      %p259 = scmp.ne.s32.totalorder %s250, %s251
      %p260 = scmp.eq.s32.totalorder %s30, 0
      %p261 = por %p259, %p260
      %p262 = scmp.ne.s32.totalorder %s250, %s251
      %p263 = scmp.eq.s32.totalorder %s31, 1
      %p264 = por %p262, %p263
      %p266 = scmp.ne.s32.totalorder %s251, %s265
      %p267 = scmp.eq.s32.totalorder %s31, 0
      %p268 = por %p266, %p267
      %s270 = sadd.s32 %s269, 1
      %p273 = scmp.eq.s32.totalorder %s25, 1
      %p274 = scmp.ne.s32.totalorder %s269, %s271
      %p275 = scmp.eq.s32.totalorder %s25, 0
      %p276 = por %p274, %p275
      %p277 = scmp.ne.s32.totalorder %s269, %s271
      %p278 = scmp.eq.s32.totalorder %s30, 1
      %p279 = por %p277, %p278
      %p280 = scmp.ne.s32.totalorder %s271, %s272
      %p281 = scmp.eq.s32.totalorder %s30, 0
      %p282 = por %p280, %p281
      %p283 = scmp.ne.s32.totalorder %s271, %s272
      %p284 = scmp.eq.s32.totalorder %s31, 1
      %p285 = por %p283, %p284
      %p287 = scmp.ne.s32.totalorder %s272, %s286
      %p288 = scmp.eq.s32.totalorder %s31, 0
      %p289 = por %p287, %p288
      %s291 = sadd.s32 %s290, 1
      %p294 = scmp.eq.s32.totalorder %s25, 1
      %p295 = scmp.ne.s32.totalorder %s290, %s292
      %p296 = scmp.eq.s32.totalorder %s25, 0
      %p297 = por %p295, %p296
      %p298 = scmp.ne.s32.totalorder %s290, %s292
      %p299 = scmp.eq.s32.totalorder %s30, 1
      %p300 = por %p298, %p299
      %p301 = scmp.ne.s32.totalorder %s292, %s293
      %p302 = scmp.eq.s32.totalorder %s30, 0
      %p303 = por %p301, %p302
      %p304 = scmp.ne.s32.totalorder %s292, %s293
      %p305 = scmp.eq.s32.totalorder %s31, 1
      %p306 = por %p304, %p305
      %p308 = scmp.ne.s32.totalorder %s293, %s307
      %p309 = scmp.eq.s32.totalorder %s31, 0
      %p310 = por %p308, %p309
      %s311 = ssub.s32 %s25, %s32
      %p312 = scmp.eq.s32.totalorder %s311, 0
      %s314 = sadd.s32 %s313, 1
      %s315 = scalar_select %p312, %s313, %s314
      %p318 = pneg %p312
      %p319 = scmp.eq.s32.totalorder %s25, 1
      %p320 = por %p318, %p319
      %p321 = scmp.ne.s32.totalorder %s313, %s316
      %p322 = scmp.eq.s32.totalorder %s25, 0
      %p323 = por %p321, %p322
      %p324 = scmp.ne.s32.totalorder %s313, %s316
      %p325 = scmp.eq.s32.totalorder %s30, 1
      %p326 = por %p324, %p325
      %p327 = scmp.ne.s32.totalorder %s316, %s317
      %p328 = scmp.eq.s32.totalorder %s30, 0
      %p329 = por %p327, %p328
      %p330 = scmp.ne.s32.totalorder %s316, %s317
      %p331 = scmp.eq.s32.totalorder %s31, 1
      %p332 = por %p330, %p331
      %p334 = scmp.ne.s32.totalorder %s317, %s333
      %p335 = scmp.eq.s32.totalorder %s31, 0
      %p336 = por %p334, %p335
      %s337 = ssub.s32 %s25, %s32
      %p338 = scmp.eq.s32.totalorder %s337, 0
      %s340 = sadd.s32 %s339, 1
      %s341 = scalar_select %p338, %s339, %s340
      %p344 = pneg %p338
      %p345 = scmp.eq.s32.totalorder %s25, 1
      %p346 = por %p344, %p345
      %p347 = scmp.ne.s32.totalorder %s339, %s342
      %p348 = scmp.eq.s32.totalorder %s25, 0
      %p349 = por %p347, %p348
      %p350 = scmp.ne.s32.totalorder %s339, %s342
      %p351 = scmp.eq.s32.totalorder %s30, 1
      %p352 = por %p350, %p351
      %p353 = scmp.ne.s32.totalorder %s342, %s343
      %p354 = scmp.eq.s32.totalorder %s30, 0
      %p355 = por %p353, %p354
      %p356 = scmp.ne.s32.totalorder %s342, %s343
      %p357 = scmp.eq.s32.totalorder %s31, 1
      %p358 = por %p356, %p357
      %p360 = scmp.ne.s32.totalorder %s343, %s359
      %p361 = scmp.eq.s32.totalorder %s31, 0
      %p362 = por %p360, %p361
      %s363 = ssub.s32 %s25, %s32
      %p364 = scmp.eq.s32.totalorder %s363, 0
      %s366 = sadd.s32 %s365, 1
      %s367 = scalar_select %p364, %s365, %s366
      %p370 = pneg %p364
      %p371 = scmp.eq.s32.totalorder %s25, 1
      %p372 = por %p370, %p371
      %p373 = scmp.ne.s32.totalorder %s365, %s368
      %p374 = scmp.eq.s32.totalorder %s25, 0
      %p375 = por %p373, %p374
      %p376 = scmp.ne.s32.totalorder %s365, %s368
      %p377 = scmp.eq.s32.totalorder %s30, 1
      %p378 = por %p376, %p377
      %p379 = scmp.ne.s32.totalorder %s368, %s369
      %p380 = scmp.eq.s32.totalorder %s30, 0
      %p381 = por %p379, %p380
      %p382 = scmp.ne.s32.totalorder %s368, %s369
      %p383 = scmp.eq.s32.totalorder %s31, 1
      %p384 = por %p382, %p383
      %p386 = scmp.ne.s32.totalorder %s369, %s385
      %p387 = scmp.eq.s32.totalorder %s31, 0
      %p388 = por %p386, %p387
      %p389 = scmp.le.s32.totalorder 1, %s25
      %p390 = scmp.lt.s32.totalorder %s25, 3
      %p391 = pnand %p389, %p390
      %p392 = pneg %p391
      // Predicated region
      $region9: #{generic_forward.1} parent=5 // pred_check
        _
      $region10: #{generic_forward.1} parent=5 // pred_check_branch
        %394 = sbr.rel (%p391) target = $region12
      $region11: #{generic_forward.1} parent=5 // pred_region
        %s395 = ssub.s32 %s25, 1
        // Predicated region
        $region13: #{generic_forward.1} parent=11 // pred_check
          %p396 = pneg %p72
        $region14: #{generic_forward.1} parent=11 // pred_check_branch
          %398 = sbr.rel (%p396) target = $region16
        $region15: #{generic_forward.1} parent=11 // pred_region
          _
        $region16: #{generic_forward.1} parent=11 // pred_fallthru
          _
        // Predicated region
        $region17: #{generic_forward.1} parent=11 // pred_check
          %p399 = pneg %p93
        $region18: #{generic_forward.1} parent=11 // pred_check_branch
          %401 = sbr.rel (%p399) target = $region20
        $region19: #{generic_forward.1} parent=11 // pred_region
          _
        $region20: #{generic_forward.1} parent=11 // pred_fallthru
          _
        // Predicated region
        $region21: #{generic_forward.1} parent=11 // pred_check
          %p402 = pneg %p114
        $region22: #{generic_forward.1} parent=11 // pred_check_branch
          %404 = sbr.rel (%p402) target = $region24
        $region23: #{generic_forward.1} parent=11 // pred_region
          _
        $region24: #{generic_forward.1} parent=11 // pred_fallthru
          _
        // Predicated region
        $region25: #{generic_forward.1} parent=11 // pred_check
          %p405 = pneg %p135
        $region26: #{generic_forward.1} parent=11 // pred_check_branch
          %407 = sbr.rel (%p405) target = $region28
        $region27: #{generic_forward.1} parent=11 // pred_region
          _
        $region28: #{generic_forward.1} parent=11 // pred_fallthru
          _
        // Predicated region
        $region29: #{generic_forward.1} parent=11 // pred_check
          %p408 = pneg %p156
        $region30: #{generic_forward.1} parent=11 // pred_check_branch
          %410 = sbr.rel (%p408) target = $region32
        $region31: #{generic_forward.1} parent=11 // pred_region
          _
        $region32: #{generic_forward.1} parent=11 // pred_fallthru
          _
        // Predicated region
        $region33: #{generic_forward.1} parent=11 // pred_check
          %p411 = pneg %p177
        $region34: #{generic_forward.1} parent=11 // pred_check_branch
          %413 = sbr.rel (%p411) target = $region36
        $region35: #{generic_forward.1} parent=11 // pred_region
          _
        $region36: #{generic_forward.1} parent=11 // pred_fallthru
          _
        // Predicated region
        $region37: #{generic_forward.1} parent=11 // pred_check
          %p414 = pneg %p198
        $region38: #{generic_forward.1} parent=11 // pred_check_branch
          %416 = sbr.rel (%p414) target = $region40
        $region39: #{generic_forward.1} parent=11 // pred_region
          _
        $region40: #{generic_forward.1} parent=11 // pred_fallthru
          _
        // Predicated region
        $region41: #{generic_forward.1} parent=11 // pred_check
          %p417 = pneg %p219
        $region42: #{generic_forward.1} parent=11 // pred_check_branch
          %419 = sbr.rel (%p417) target = $region44
        $region43: #{generic_forward.1} parent=11 // pred_region
          _
        $region44: #{generic_forward.1} parent=11 // pred_fallthru
          _
        // Predicated region
        $region45: #{generic_forward.1} parent=11 // pred_check
          %p420 = pneg %p240
        $region46: #{generic_forward.1} parent=11 // pred_check_branch
          %422 = sbr.rel (%p420) target = $region48
        $region47: #{generic_forward.1} parent=11 // pred_region
          _
        $region48: #{generic_forward.1} parent=11 // pred_fallthru
          _
        // Predicated region
        $region49: #{generic_forward.1} parent=11 // pred_check
          %p423 = pneg %p261
        $region50: #{generic_forward.1} parent=11 // pred_check_branch
          %425 = sbr.rel (%p423) target = $region52
        $region51: #{generic_forward.1} parent=11 // pred_region
          _
        $region52: #{generic_forward.1} parent=11 // pred_fallthru
          _
        // Predicated region
        $region53: #{generic_forward.1} parent=11 // pred_check
          %p426 = pneg %p282
        $region54: #{generic_forward.1} parent=11 // pred_check_branch
          %428 = sbr.rel (%p426) target = $region56
        $region55: #{generic_forward.1} parent=11 // pred_region
          _
        $region56: #{generic_forward.1} parent=11 // pred_fallthru
          _
        // Predicated region
        $region57: #{generic_forward.1} parent=11 // pred_check
          %p429 = pneg %p303
        $region58: #{generic_forward.1} parent=11 // pred_check_branch
          %431 = sbr.rel (%p429) target = $region60
        $region59: #{generic_forward.1} parent=11 // pred_region
          _
        $region60: #{generic_forward.1} parent=11 // pred_fallthru
          _
      $region12: #{generic_forward.1} parent=5 // pred_fallthru
        _
      %p432 = scmp.lt.s32.totalorder %s25, 2
      // Predicated region
      $region61: #{generic_forward.1} parent=5 // pred_check
        %p433 = pneg %p432
      $region62: #{generic_forward.1} parent=5 // pred_check_branch
        %435 = sbr.rel (%p433) target = $region64
      $region63: #{generic_forward.1} parent=5 // pred_region
        // Predicated region
        $region65: #{generic_forward.1} parent=63 // pred_check
          %p436 = pneg %p45
        $region66: #{generic_forward.1} parent=63 // pred_check_branch
          %438 = sbr.rel (%p436) target = $region68
        $region67: #{generic_forward.1} parent=63 // pred_region
          %p439 = scmp.lt.s32.totalorder %s25, 1
          %s440 = scalar_select %p439, %s25, 1
          %s441 = smul.addr %s440, 32
          %s442 = smul.addr %s441, 4
          %s443 = scalar_lea.vmem %s0, %s442
        $region68: #{generic_forward.1} parent=63 // pred_fallthru
          _
      $region64: #{generic_forward.1} parent=5 // pred_fallthru
        _
      %p444 = scmp.le.s32.totalorder 1, %s25
      %p445 = scmp.lt.s32.totalorder %s25, 3
      %p446 = pnand %p444, %p445
      %p447 = pneg %p446
      // Predicated region
      $region69: #{generic_forward.1} parent=5 // pred_check
        _
      $region70: #{generic_forward.1} parent=5 // pred_check_branch
        %449 = sbr.rel (%p446) target = $region72
      $region71: #{generic_forward.1} parent=5 // pred_region
        %s450 = ssub.s32 %s25, 1
        %p451 = scmp.lt.s32.totalorder %s30, 1
        %s452 = scalar_select %p451, %s30, 1
        %s453 = smul.addr %s452, 32
        %s454 = smul.addr %s453, 4
        %s455 = scalar_lea.vmem %s0, %s454
        %p456 = pneg %p51
        %p457 = pneg %p48
        %p458 = pneg %p72
        %p459 = pneg %p69
        %p460 = pneg %p93
        %p461 = pneg %p90
        %p462 = pneg %p114
        %p463 = pneg %p111
        %p464 = pneg %p135
        %p465 = pneg %p132
        %p466 = pneg %p156
        %p467 = pneg %p153
        %p468 = pneg %p177
        %p469 = pneg %p174
        %p470 = pneg %p198
        %p471 = pneg %p195
        %p472 = pneg %p219
        %p473 = pneg %p216
        %p474 = pneg %p240
        %p475 = pneg %p237
        %p476 = pneg %p261
        %p477 = pneg %p258
        %p478 = pneg %p282
        %p479 = pneg %p279
        %p480 = pneg %p303
        %p481 = pneg %p300
        %p482 = pneg %p329
        %p483 = pneg %p326
        %s484 = sand.u32 %s316, 1
        %s485 = scalar_lea.sflag [#allocation3], %s484
        %s486 = sand.u32 %s316, 1
        %s487 = scalar_lea.vmem [#allocation2], %s486
        %p488 = pneg %p355
        %p489 = pneg %p352
        %p490 = scmp.lt.s32.totalorder %s30, 1
        %s491 = scalar_select %p490, %s30, 1
        %s492 = scalar_lea.vmem %s14, %s491
        %p493 = pneg %p381
        %p494 = pneg %p378
        %p495 = scmp.lt.s32.totalorder %s30, 1
        %s496 = scalar_select %p495, %s30, 1
        %s497 = smul.addr %s496, 8
        %s498 = smul.addr %s497, 4
        %s499 = scalar_lea.vmem %s15, %s498
        %p500 = scmp.lt.s32.totalorder %s30, 1
        %s501 = scalar_select %p500, %s30, 1
        %s502 = smul.addr %s501, 32
        %s503 = smul.addr %s502, 4
        %s504 = scalar_lea.vmem %s0, %s503
        %p505 = scmp.lt.s32.totalorder %s30, 1
        %s506 = scalar_select %p505, %s30, 1
        %s507 = scalar_lea.vmem %s14, %s506
        %p508 = scmp.lt.s32.totalorder %s30, 1
        %s509 = scalar_select %p508, %s30, 1
        %s510 = smul.addr %s509, 8
        %s511 = smul.addr %s510, 4
        %s512 = scalar_lea.vmem %s15, %s511
        %v514 = vld [vmem:[%s504] sm:$0xf]
        %v515 = vld [vmem:[%s504 + $0x4] sm:$0xf]
        %v516 = vld [vmem:[%s504 + $0x8] sm:$0xf]
        %v517 = vld [vmem:[%s504 + $0xc] sm:$0xf]
        %v518 = vld [vmem:[%s504 + $0x10] sm:$0xf]
        %v519 = vld [vmem:[%s504 + $0x14] sm:$0xf]
        %v520 = vld [vmem:[%s504 + $0x18] sm:$0xf]
        %v521 = vld [vmem:[%s504 + $0x1c] sm:$0xf]
        %v522 = vld [vmem:[%s1] sm:$0xf]
        %v523 = vld [vmem:[%s1 + $0x4] sm:$0xf]
        %v524 = vld [vmem:[%s1 + $0x8] sm:$0xf]
        %v525 = vld [vmem:[%s1 + $0xc] sm:$0x3]
        %v526 = vld [vmem:[%s2] sm:$0x1]
        %v528 = vlaneseq
        %v529 = vshrl.u32 %v528, 7
        %v530 = vsub.s32 0, %v529
        %v531 = vrot.slane %v526, %v530
        %v541 = vunpack.c.l.b16 %v514
        %v542 = vunpack.c.l.b16 %v515
        %v543 = vunpack.c.l.b16 %v516
        %v544 = vunpack.c.l.b16 %v517
        %v545 = vunpack.c.l.b16 %v518
        %v546 = vunpack.c.l.b16 %v519
        %v547 = vunpack.c.l.b16 %v520
        %v548 = vunpack.c.l.b16 %v521
        %v549 = vpack.c.b16 %v542, %v541
        %v550 = vpack.c.b16 %v544, %v543
        %v551 = vpack.c.b16 %v546, %v545
        %v552 = vpack.c.b16 %v548, %v547
        %v557 = vunpack.c.l.b16 %v522
        %v558 = vunpack.c.l.b16 %v523
        %v559 = vunpack.c.l.b16 %v524
        %v560 = vunpack.c.l.b16 %v525
        %v561 = vpack.c.b16 %v558, %v557
        %v562 = vpack.c.b16 %v560, %v559
        %vm564 = vcmask 220160
        %v566 = vsel %vm564, %v549, 0
        %v569 = vsel %vm564, %v550, 0
        %v572 = vsel %vm564, %v551, 0
        %v575 = vsel %vm564, %v552, 0
        %vm577 = vcmask 1044480
        %vm578 = vcmask 1045504
        %v579 = vsel %vm577, 4294967295, 65535
        %v580 = vsel %vm578, %v579, 0
        %v582 = vand.u32 %v562, %v580
        %584 = vmatprep.subr.bf16.mxu0 0
        %585 = vmatpush1.bf16.msra.mxu0 0
        %586 = vmatprep.subr.bf16.mxu0 0
        %587 = vmatpush1.bf16.msra.mxu0 0
        %588 = vmatprep.subr.bf16.mxu0 0
        %589 = vmatpush1.bf16.msra.mxu0 0
        %590 = vmatprep.subr.bf16.mxu0 0
        %591 = vmatpush1.bf16.msra.mxu0 0
        %592 = vmatprep.subr.bf16.mxu0 0
        %593 = vmatpush1.bf16.msra.mxu0 0
        %594 = vmatprep.subr.bf16.mxu0 0
        %595 = vmatpush1.bf16.msra.mxu0 0
        %596 = vmatprep.subr.bf16.mxu0 0
        %597 = vmatpush1.bf16.msra.mxu0 %v582
        %598 = vmatprep.subr.bf16.mxu0 0
        %599 = vmatpush1.bf16.msra.mxu0 %v561
        %600 = vmatprep.subr.bf16.mxu0 0
        %601 = vmatpush2.bf16.msra.mxu0 0
        %602 = vmatprep.subr.bf16.mxu0 0
        %603 = vmatpush2.bf16.msra.mxu0 0
        %604 = vmatprep.subr.bf16.mxu0 0
        %605 = vmatpush2.bf16.msra.mxu0 0
        %606 = vmatprep.subr.bf16.mxu0 0
        %607 = vmatpush2.bf16.msra.mxu0 0
        %608 = vmatprep.subr.bf16.mxu0 0
        %609 = vmatpush2.bf16.msra.mxu0 0
        %610 = vmatprep.subr.bf16.mxu0 0
        %611 = vmatpush2.bf16.msra.mxu0 0
        %612 = vmatprep.subr.bf16.mxu0 0
        %613 = vmatpush2.bf16.msra.mxu0 0
        %614 = vmatprep.subr.bf16.mxu0 0
        %615 = vmatpush2.bf16.msra.mxu0 0
        %616 = vmatprep.mubr.bf16.mxu0 0
        %617 = vmatmul.mubr.bf16.gmra.mxu0 %v566
        %v618 = vpop.f32.mrf.mxu0
        %v619 = vadd.f32 %v531, %v618
        %v620 = vpop.f32.mrf.mxu0
        %v621 = vpop.f32.mrf.mxu0
        %v622 = vadd.f32 %v531, %v621
        %v623 = vpop.f32.mrf.mxu0
        %624 = vmatprep.mubr.bf16.mxu0 0
        %625 = vmatmul.mubr.bf16.gmra.mxu0 %v569
        %v626 = vpop.f32.mrf.mxu0
        %v627 = vadd.f32 %v531, %v626
        %v628 = vpop.f32.mrf.mxu0
        %v629 = vpop.f32.mrf.mxu0
        %v630 = vadd.f32 %v531, %v629
        %v631 = vpop.f32.mrf.mxu0
        %632 = vmatprep.mubr.bf16.mxu0 0
        %633 = vmatmul.mubr.bf16.gmra.mxu0 %v572
        %v634 = vpop.f32.mrf.mxu0
        %v635 = vadd.f32 %v531, %v634
        %v636 = vpop.f32.mrf.mxu0
        %v637 = vpop.f32.mrf.mxu0
        %v638 = vadd.f32 %v531, %v637
        %v639 = vpop.f32.mrf.mxu0
        %640 = vmatprep.mubr.bf16.mxu0 0
        %641 = vmatmul.mubr.bf16.gmra.mxu0 %v575
        %v642 = vpop.f32.mrf.mxu0
        %v643 = vadd.f32 %v531, %v642
        %v644 = vpop.f32.mrf.mxu0
        %v645 = vpop.f32.mrf.mxu0
        %v646 = vadd.f32 %v531, %v645
        %v647 = vpop.f32.mrf.mxu0
        %648 = vdwg.mxu0
        %v649 = vmax.f32 %v619, 0.0
        %v650 = vmax.f32 %v622, 0.0
        %v651 = vmax.f32 %v627, 0.0
        %v652 = vmax.f32 %v630, 0.0
        %v653 = vmax.f32 %v635, 0.0
        %v654 = vmax.f32 %v638, 0.0
        %v655 = vmax.f32 %v643, 0.0
        %v656 = vmax.f32 %v646, 0.0
        %v665 = vrot.slane %v649, 7
        %v666 = vrot.slane %v650, 7
        %v667 = vrot.slane %v651, 7
        %v668 = vrot.slane %v652, 7
        %v669 = vrot.slane %v653, 7
        %v670 = vrot.slane %v654, 7
        %v671 = vrot.slane %v655, 7
        %v672 = vrot.slane %v656, 7
        %vm681 = vcmask 1040384
        %v682 = vsel %vm681, 0.0, %v665
        %v683 = vsel %vm681, 0.0, %v666
        %v684 = vsel %vm681, 0.0, %v667
        %v685 = vsel %vm681, 0.0, %v668
        %v686 = vsel %vm681, 0.0, %v669
        %v687 = vsel %vm681, 0.0, %v670
        %v688 = vsel %vm681, 0.0, %v671
        %v689 = vsel %vm681, 0.0, %v672
        %s690 = scalar_lea.vmem %s504, 32
        %v691 = vld [vmem:[%s690] sm:$0xf]
        %v692 = vld [vmem:[%s690 + $0x4] sm:$0xf]
        %v693 = vld [vmem:[%s690 + $0x8] sm:$0xf]
        %v694 = vld [vmem:[%s690 + $0xc] sm:$0xf]
        %v695 = vld [vmem:[%s690 + $0x10] sm:$0xf]
        %v696 = vld [vmem:[%s690 + $0x14] sm:$0xf]
        %v697 = vld [vmem:[%s690 + $0x18] sm:$0xf]
        %v698 = vld [vmem:[%s690 + $0x1c] sm:$0xf]
        %v707 = vunpack.c.l.b16 %v691
        %v708 = vunpack.c.l.b16 %v692
        %v709 = vunpack.c.l.b16 %v693
        %v710 = vunpack.c.l.b16 %v694
        %v711 = vunpack.c.l.b16 %v695
        %v712 = vunpack.c.l.b16 %v696
        %v713 = vunpack.c.l.b16 %v697
        %v714 = vunpack.c.l.b16 %v698
        %v715 = vpack.c.b16 %v708, %v707
        %v716 = vpack.c.b16 %v710, %v709
        %v717 = vpack.c.b16 %v712, %v711
        %v718 = vpack.c.b16 %v714, %v713
        %v720 = vsel %vm564, %v715, 0
        %v723 = vsel %vm564, %v716, 0
        %v726 = vsel %vm564, %v717, 0
        %v729 = vsel %vm564, %v718, 0
        %731 = vmatprep.subr.bf16.mxu0 0
        %732 = vmatpush1.bf16.msra.mxu0 0
        %733 = vmatprep.subr.bf16.mxu0 0
        %734 = vmatpush1.bf16.msra.mxu0 0
        %735 = vmatprep.subr.bf16.mxu0 0
        %736 = vmatpush1.bf16.msra.mxu0 0
        %737 = vmatprep.subr.bf16.mxu0 0
        %738 = vmatpush1.bf16.msra.mxu0 0
        %739 = vmatprep.subr.bf16.mxu0 0
        %740 = vmatpush1.bf16.msra.mxu0 0
        %741 = vmatprep.subr.bf16.mxu0 0
        %742 = vmatpush1.bf16.msra.mxu0 0
        %743 = vmatprep.subr.bf16.mxu0 0
        %744 = vmatpush1.bf16.msra.mxu0 %v582
        %745 = vmatprep.subr.bf16.mxu0 0
        %746 = vmatpush1.bf16.msra.mxu0 %v561
        %747 = vmatprep.subr.bf16.mxu0 0
        %748 = vmatpush2.bf16.msra.mxu0 0
        %749 = vmatprep.subr.bf16.mxu0 0
        %750 = vmatpush2.bf16.msra.mxu0 0
        %751 = vmatprep.subr.bf16.mxu0 0
        %752 = vmatpush2.bf16.msra.mxu0 0
        %753 = vmatprep.subr.bf16.mxu0 0
        %754 = vmatpush2.bf16.msra.mxu0 0
        %755 = vmatprep.subr.bf16.mxu0 0
        %756 = vmatpush2.bf16.msra.mxu0 0
        %757 = vmatprep.subr.bf16.mxu0 0
        %758 = vmatpush2.bf16.msra.mxu0 0
        %759 = vmatprep.subr.bf16.mxu0 0
        %760 = vmatpush2.bf16.msra.mxu0 0
        %761 = vmatprep.subr.bf16.mxu0 0
        %762 = vmatpush2.bf16.msra.mxu0 0
        %763 = vmatprep.mubr.bf16.mxu0 0
        %764 = vmatmul.mubr.bf16.gmra.mxu0 %v720
        %v765 = vpop.f32.mrf.mxu0
        %v766 = vadd.f32 %v531, %v765
        %v767 = vpop.f32.mrf.mxu0
        %v768 = vpop.f32.mrf.mxu0
        %v769 = vadd.f32 %v531, %v768
        %v770 = vpop.f32.mrf.mxu0
        %771 = vmatprep.mubr.bf16.mxu0 0
        %772 = vmatmul.mubr.bf16.gmra.mxu0 %v723
        %v773 = vpop.f32.mrf.mxu0
        %v774 = vadd.f32 %v531, %v773
        %v775 = vpop.f32.mrf.mxu0
        %v776 = vpop.f32.mrf.mxu0
        %v777 = vadd.f32 %v531, %v776
        %v778 = vpop.f32.mrf.mxu0
        %779 = vmatprep.mubr.bf16.mxu0 0
        %780 = vmatmul.mubr.bf16.gmra.mxu0 %v726
        %v781 = vpop.f32.mrf.mxu0
        %v782 = vadd.f32 %v531, %v781
        %v783 = vpop.f32.mrf.mxu0
        %v784 = vpop.f32.mrf.mxu0
        %v785 = vadd.f32 %v531, %v784
        %v786 = vpop.f32.mrf.mxu0
        %787 = vmatprep.mubr.bf16.mxu0 0
        %788 = vmatmul.mubr.bf16.gmra.mxu0 %v729
        %v789 = vpop.f32.mrf.mxu0
        %v790 = vadd.f32 %v531, %v789
        %v791 = vpop.f32.mrf.mxu0
        %v792 = vpop.f32.mrf.mxu0
        %v793 = vadd.f32 %v531, %v792
        %v794 = vpop.f32.mrf.mxu0
        %795 = vdwg.mxu0
        %v796 = vmax.f32 %v766, 0.0
        %v797 = vmax.f32 %v769, 0.0
        %v798 = vmax.f32 %v774, 0.0
        %v799 = vmax.f32 %v777, 0.0
        %v800 = vmax.f32 %v782, 0.0
        %v801 = vmax.f32 %v785, 0.0
        %v802 = vmax.f32 %v790, 0.0
        %v803 = vmax.f32 %v793, 0.0
        %v812 = vrot.slane %v796, 7
        %v813 = vrot.slane %v797, 7
        %v814 = vrot.slane %v798, 7
        %v815 = vrot.slane %v799, 7
        %v816 = vrot.slane %v800, 7
        %v817 = vrot.slane %v801, 7
        %v818 = vrot.slane %v802, 7
        %v819 = vrot.slane %v803, 7
        %v828 = vsel %vm681, 0.0, %v812
        %v829 = vsel %vm681, 0.0, %v813
        %v830 = vsel %vm681, 0.0, %v814
        %v831 = vsel %vm681, 0.0, %v815
        %v832 = vsel %vm681, 0.0, %v816
        %v833 = vsel %vm681, 0.0, %v817
        %v834 = vsel %vm681, 0.0, %v818
        %v835 = vsel %vm681, 0.0, %v819
        %s836 = scalar_lea.vmem %s504, 64
        %v837 = vld [vmem:[%s836] sm:$0xf]
        %v838 = vld [vmem:[%s836 + $0x4] sm:$0xf]
        %v839 = vld [vmem:[%s836 + $0x8] sm:$0xf]
        %v840 = vld [vmem:[%s836 + $0xc] sm:$0xf]
        %v841 = vld [vmem:[%s836 + $0x10] sm:$0xf]
        %v842 = vld [vmem:[%s836 + $0x14] sm:$0xf]
        %v843 = vld [vmem:[%s836 + $0x18] sm:$0xf]
        %v844 = vld [vmem:[%s836 + $0x1c] sm:$0xf]
        %v853 = vunpack.c.l.b16 %v837
        %v854 = vunpack.c.l.b16 %v838
        %v855 = vunpack.c.l.b16 %v839
        %v856 = vunpack.c.l.b16 %v840
        %v857 = vunpack.c.l.b16 %v841
        %v858 = vunpack.c.l.b16 %v842
        %v859 = vunpack.c.l.b16 %v843
        %v860 = vunpack.c.l.b16 %v844
        %v861 = vpack.c.b16 %v854, %v853
        %v862 = vpack.c.b16 %v856, %v855
        %v863 = vpack.c.b16 %v858, %v857
        %v864 = vpack.c.b16 %v860, %v859
        %v866 = vsel %vm564, %v861, 0
        %v869 = vsel %vm564, %v862, 0
        %v872 = vsel %vm564, %v863, 0
        %v875 = vsel %vm564, %v864, 0
        %877 = vmatprep.subr.bf16.mxu0 0
        %878 = vmatpush1.bf16.msra.mxu0 0
        %879 = vmatprep.subr.bf16.mxu0 0
        %880 = vmatpush1.bf16.msra.mxu0 0
        %881 = vmatprep.subr.bf16.mxu0 0
        %882 = vmatpush1.bf16.msra.mxu0 0
        %883 = vmatprep.subr.bf16.mxu0 0
        %884 = vmatpush1.bf16.msra.mxu0 0
        %885 = vmatprep.subr.bf16.mxu0 0
        %886 = vmatpush1.bf16.msra.mxu0 0
        %887 = vmatprep.subr.bf16.mxu0 0
        %888 = vmatpush1.bf16.msra.mxu0 0
        %889 = vmatprep.subr.bf16.mxu0 0
        %890 = vmatpush1.bf16.msra.mxu0 %v582
        %891 = vmatprep.subr.bf16.mxu0 0
        %892 = vmatpush1.bf16.msra.mxu0 %v561
        %893 = vmatprep.subr.bf16.mxu0 0
        %894 = vmatpush2.bf16.msra.mxu0 0
        %895 = vmatprep.subr.bf16.mxu0 0
        %896 = vmatpush2.bf16.msra.mxu0 0
        %897 = vmatprep.subr.bf16.mxu0 0
        %898 = vmatpush2.bf16.msra.mxu0 0
        %899 = vmatprep.subr.bf16.mxu0 0
        %900 = vmatpush2.bf16.msra.mxu0 0
        %901 = vmatprep.subr.bf16.mxu0 0
        %902 = vmatpush2.bf16.msra.mxu0 0
        %903 = vmatprep.subr.bf16.mxu0 0
        %904 = vmatpush2.bf16.msra.mxu0 0
        %905 = vmatprep.subr.bf16.mxu0 0
        %906 = vmatpush2.bf16.msra.mxu0 0
        %907 = vmatprep.subr.bf16.mxu0 0
        %908 = vmatpush2.bf16.msra.mxu0 0
        %909 = vmatprep.mubr.bf16.mxu0 0
        %910 = vmatmul.mubr.bf16.gmra.mxu0 %v866
        %v911 = vpop.f32.mrf.mxu0
        %v912 = vadd.f32 %v531, %v911
        %v913 = vpop.f32.mrf.mxu0
        %v914 = vpop.f32.mrf.mxu0
        %v915 = vadd.f32 %v531, %v914
        %v916 = vpop.f32.mrf.mxu0
        %917 = vmatprep.mubr.bf16.mxu0 0
        %918 = vmatmul.mubr.bf16.gmra.mxu0 %v869
        %v919 = vpop.f32.mrf.mxu0
        %v920 = vadd.f32 %v531, %v919
        %v921 = vpop.f32.mrf.mxu0
        %v922 = vpop.f32.mrf.mxu0
        %v923 = vadd.f32 %v531, %v922
        %v924 = vpop.f32.mrf.mxu0
        %925 = vmatprep.mubr.bf16.mxu0 0
        %926 = vmatmul.mubr.bf16.gmra.mxu0 %v872
        %v927 = vpop.f32.mrf.mxu0
        %v928 = vadd.f32 %v531, %v927
        %v929 = vpop.f32.mrf.mxu0
        %v930 = vpop.f32.mrf.mxu0
        %v931 = vadd.f32 %v531, %v930
        %v932 = vpop.f32.mrf.mxu0
        %933 = vmatprep.mubr.bf16.mxu0 0
        %934 = vmatmul.mubr.bf16.gmra.mxu0 %v875
        %v935 = vpop.f32.mrf.mxu0
        %v936 = vadd.f32 %v531, %v935
        %v937 = vpop.f32.mrf.mxu0
        %v938 = vpop.f32.mrf.mxu0
        %v939 = vadd.f32 %v531, %v938
        %v940 = vpop.f32.mrf.mxu0
        %941 = vdwg.mxu0
        %v942 = vmax.f32 %v912, 0.0
        %v943 = vmax.f32 %v915, 0.0
        %v944 = vmax.f32 %v920, 0.0
        %v945 = vmax.f32 %v923, 0.0
        %v946 = vmax.f32 %v928, 0.0
        %v947 = vmax.f32 %v931, 0.0
        %v948 = vmax.f32 %v936, 0.0
        %v949 = vmax.f32 %v939, 0.0
        %v959 = vrot.slane 0.0, 7
        %v960 = vrot.slane %v942, 7
        %v961 = vrot.slane %v943, 7
        %v962 = vrot.slane %v944, 7
        %v963 = vrot.slane %v945, 7
        %v964 = vrot.slane %v946, 7
        %v965 = vrot.slane %v947, 7
        %v966 = vrot.slane %v948, 7
        %v967 = vrot.slane %v949, 7
        %v977 = vsel %vm681, 0.0, %v959
        %v978 = vsel %vm681, 0.0, %v960
        %v979 = vsel %vm681, 0.0, %v961
        %v980 = vsel %vm681, 0.0, %v962
        %v981 = vsel %vm681, 0.0, %v963
        %v982 = vsel %vm681, 0.0, %v964
        %v983 = vsel %vm681, 0.0, %v965
        %v984 = vsel %vm681, 0.0, %v966
        %v985 = vsel %vm681, 0.0, %v967
        %s986 = scalar_lea.vmem %s504, 96
        %v987 = vld [vmem:[%s986] sm:$0xf]
        %v988 = vld [vmem:[%s986 + $0x4] sm:$0xf]
        %v989 = vld [vmem:[%s986 + $0x8] sm:$0xf]
        %v990 = vld [vmem:[%s986 + $0xc] sm:$0xf]
        %v991 = vld [vmem:[%s986 + $0x10] sm:$0xf]
        %v992 = vld [vmem:[%s986 + $0x14] sm:$0xf]
        %v993 = vld [vmem:[%s986 + $0x18] sm:$0xf]
        %v994 = vld [vmem:[%s986 + $0x1c] sm:$0xf]
        %v1003 = vunpack.c.l.b16 %v987
        %v1004 = vunpack.c.l.b16 %v988
        %v1005 = vunpack.c.l.b16 %v989
        %v1006 = vunpack.c.l.b16 %v990
        %v1007 = vunpack.c.l.b16 %v991
        %v1008 = vunpack.c.l.b16 %v992
        %v1009 = vunpack.c.l.b16 %v993
        %v1010 = vunpack.c.l.b16 %v994
        %v1011 = vpack.c.b16 %v1004, %v1003
        %v1012 = vpack.c.b16 %v1006, %v1005
        %v1013 = vpack.c.b16 %v1008, %v1007
        %v1014 = vpack.c.b16 %v1010, %v1009
        %v1016 = vsel %vm564, %v1011, 0
        %v1019 = vsel %vm564, %v1012, 0
        %v1022 = vsel %vm564, %v1013, 0
        %v1025 = vsel %vm564, %v1014, 0
        %1027 = vmatprep.subr.bf16.mxu0 0
        %1028 = vmatpush1.bf16.msra.mxu0 0
        %1029 = vmatprep.subr.bf16.mxu0 0
        %1030 = vmatpush1.bf16.msra.mxu0 0
        %1031 = vmatprep.subr.bf16.mxu0 0
        %1032 = vmatpush1.bf16.msra.mxu0 0
        %1033 = vmatprep.subr.bf16.mxu0 0
        %1034 = vmatpush1.bf16.msra.mxu0 0
        %1035 = vmatprep.subr.bf16.mxu0 0
        %1036 = vmatpush1.bf16.msra.mxu0 0
        %1037 = vmatprep.subr.bf16.mxu0 0
        %1038 = vmatpush1.bf16.msra.mxu0 0
        %1039 = vmatprep.subr.bf16.mxu0 0
        %1040 = vmatpush1.bf16.msra.mxu0 %v582
        %1041 = vmatprep.subr.bf16.mxu0 0
        %1042 = vmatpush1.bf16.msra.mxu0 %v561
        %1043 = vmatprep.subr.bf16.mxu0 0
        %1044 = vmatpush2.bf16.msra.mxu0 0
        %1045 = vmatprep.subr.bf16.mxu0 0
        %1046 = vmatpush2.bf16.msra.mxu0 0
        %1047 = vmatprep.subr.bf16.mxu0 0
        %1048 = vmatpush2.bf16.msra.mxu0 0
        %1049 = vmatprep.subr.bf16.mxu0 0
        %1050 = vmatpush2.bf16.msra.mxu0 0
        %1051 = vmatprep.subr.bf16.mxu0 0
        %1052 = vmatpush2.bf16.msra.mxu0 0
        %1053 = vmatprep.subr.bf16.mxu0 0
        %1054 = vmatpush2.bf16.msra.mxu0 0
        %1055 = vmatprep.subr.bf16.mxu0 0
        %1056 = vmatpush2.bf16.msra.mxu0 0
        %1057 = vmatprep.subr.bf16.mxu0 0
        %1058 = vmatpush2.bf16.msra.mxu0 0
        %1059 = vmatprep.mubr.bf16.mxu0 0
        %1060 = vmatmul.mubr.bf16.gmra.mxu0 %v1016
        %v1061 = vpop.f32.mrf.mxu0
        %v1062 = vadd.f32 %v531, %v1061
        %v1063 = vpop.f32.mrf.mxu0
        %v1064 = vpop.f32.mrf.mxu0
        %v1065 = vadd.f32 %v531, %v1064
        %v1066 = vpop.f32.mrf.mxu0
        %1067 = vmatprep.mubr.bf16.mxu0 0
        %1068 = vmatmul.mubr.bf16.gmra.mxu0 %v1019
        %v1069 = vpop.f32.mrf.mxu0
        %v1070 = vadd.f32 %v531, %v1069
        %v1071 = vpop.f32.mrf.mxu0
        %v1072 = vpop.f32.mrf.mxu0
        %v1073 = vadd.f32 %v531, %v1072
        %v1074 = vpop.f32.mrf.mxu0
        %1075 = vmatprep.mubr.bf16.mxu0 0
        %1076 = vmatmul.mubr.bf16.gmra.mxu0 %v1022
        %v1077 = vpop.f32.mrf.mxu0
        %v1078 = vadd.f32 %v531, %v1077
        %v1079 = vpop.f32.mrf.mxu0
        %v1080 = vpop.f32.mrf.mxu0
        %v1081 = vadd.f32 %v531, %v1080
        %v1082 = vpop.f32.mrf.mxu0
        %1083 = vmatprep.mubr.bf16.mxu0 0
        %1084 = vmatmul.mubr.bf16.gmra.mxu0 %v1025
        %v1085 = vpop.f32.mrf.mxu0
        %v1086 = vadd.f32 %v531, %v1085
        %v1087 = vpop.f32.mrf.mxu0
        %v1088 = vpop.f32.mrf.mxu0
        %v1089 = vadd.f32 %v531, %v1088
        %v1090 = vpop.f32.mrf.mxu0
        %1091 = vdwg.mxu0
        %v1092 = vmax.f32 %v1062, 0.0
        %v1093 = vmax.f32 %v1065, 0.0
        %v1094 = vmax.f32 %v1070, 0.0
        %v1095 = vmax.f32 %v1073, 0.0
        %v1096 = vmax.f32 %v1078, 0.0
        %v1097 = vmax.f32 %v1081, 0.0
        %v1098 = vmax.f32 %v1086, 0.0
        %v1099 = vmax.f32 %v1089, 0.0
        %v1108 = vrot.slane %v1092, 7
        %v1109 = vrot.slane %v1093, 7
        %v1110 = vrot.slane %v1094, 7
        %v1111 = vrot.slane %v1095, 7
        %v1112 = vrot.slane %v1096, 7
        %v1113 = vrot.slane %v1097, 7
        %v1114 = vrot.slane %v1098, 7
        %v1115 = vrot.slane %v1099, 7
        %v1124 = vsel %vm681, 0.0, %v1108
        %v1125 = vsel %vm681, 0.0, %v1109
        %v1126 = vsel %vm681, 0.0, %v1110
        %v1127 = vsel %vm681, 0.0, %v1111
        %v1128 = vsel %vm681, 0.0, %v1112
        %v1129 = vsel %vm681, 0.0, %v1113
        %v1130 = vsel %vm681, 0.0, %v1114
        %v1131 = vsel %vm681, 0.0, %v1115
        %vm1140 = vcmask 1046528
        %v1141 = vrot.slane %v977, 1
        %v1142 = vrot.slane %v959, 1
        %v1143 = vsel %vm1140, %v1141, %v1142
        %v1144 = vrot.slane %v978, 1
        %v1145 = vrot.slane %v960, 1
        %v1146 = vsel %vm1140, %v1144, %v1145
        %v1147 = vrot.slane %v979, 1
        %v1148 = vrot.slane %v961, 1
        %v1149 = vsel %vm1140, %v1147, %v1148
        %v1150 = vrot.slane %v980, 1
        %v1151 = vrot.slane %v962, 1
        %v1152 = vsel %vm1140, %v1150, %v1151
        %v1153 = vrot.slane %v981, 1
        %v1154 = vrot.slane %v963, 1
        %v1155 = vsel %vm1140, %v1153, %v1154
        %v1156 = vrot.slane %v982, 1
        %v1157 = vrot.slane %v964, 1
        %v1158 = vsel %vm1140, %v1156, %v1157
        %v1159 = vrot.slane %v983, 1
        %v1160 = vrot.slane %v965, 1
        %v1161 = vsel %vm1140, %v1159, %v1160
        %v1162 = vrot.slane %v984, 1
        %v1163 = vrot.slane %v966, 1
        %v1164 = vsel %vm1140, %v1162, %v1163
        %v1172 = vrot.slane %v1124, 1
        %v1173 = vrot.slane %v1108, 1
        %v1174 = vsel %vm1140, %v1172, %v1173
        %v1175 = vrot.slane %v1125, 1
        %v1176 = vrot.slane %v1109, 1
        %v1177 = vsel %vm1140, %v1175, %v1176
        %v1178 = vrot.slane %v1126, 1
        %v1179 = vrot.slane %v1110, 1
        %v1180 = vsel %vm1140, %v1178, %v1179
        %v1181 = vrot.slane %v1127, 1
        %v1182 = vrot.slane %v1111, 1
        %v1183 = vsel %vm1140, %v1181, %v1182
        %v1184 = vrot.slane %v1128, 1
        %v1185 = vrot.slane %v1112, 1
        %v1186 = vsel %vm1140, %v1184, %v1185
        %v1187 = vrot.slane %v1129, 1
        %v1188 = vrot.slane %v1113, 1
        %v1189 = vsel %vm1140, %v1187, %v1188
        %v1190 = vrot.slane %v1130, 1
        %v1191 = vrot.slane %v1114, 1
        %v1192 = vsel %vm1140, %v1190, %v1191
        %v1201 = vrot.slane %v682, 1
        %v1202 = vrot.slane %v665, 1
        %v1203 = vsel %vm1140, %v1201, %v1202
        %v1204 = vrot.slane %v683, 1
        %v1205 = vrot.slane %v666, 1
        %v1206 = vsel %vm1140, %v1204, %v1205
        %v1207 = vrot.slane %v684, 1
        %v1208 = vrot.slane %v667, 1
        %v1209 = vsel %vm1140, %v1207, %v1208
        %v1210 = vrot.slane %v685, 1
        %v1211 = vrot.slane %v668, 1
        %v1212 = vsel %vm1140, %v1210, %v1211
        %v1213 = vrot.slane %v686, 1
        %v1214 = vrot.slane %v669, 1
        %v1215 = vsel %vm1140, %v1213, %v1214
        %v1216 = vrot.slane %v687, 1
        %v1217 = vrot.slane %v670, 1
        %v1218 = vsel %vm1140, %v1216, %v1217
        %v1219 = vrot.slane %v688, 1
        %v1220 = vrot.slane %v671, 1
        %v1221 = vsel %vm1140, %v1219, %v1220
        %v1222 = vrot.slane %v689, 1
        %v1223 = vrot.slane %v672, 1
        %v1224 = vsel %vm1140, %v1222, %v1223
        %v1233 = vrot.slane %v828, 1
        %v1234 = vrot.slane %v812, 1
        %v1235 = vsel %vm1140, %v1233, %v1234
        %v1236 = vrot.slane %v829, 1
        %v1237 = vrot.slane %v813, 1
        %v1238 = vsel %vm1140, %v1236, %v1237
        %v1239 = vrot.slane %v830, 1
        %v1240 = vrot.slane %v814, 1
        %v1241 = vsel %vm1140, %v1239, %v1240
        %v1242 = vrot.slane %v831, 1
        %v1243 = vrot.slane %v815, 1
        %v1244 = vsel %vm1140, %v1242, %v1243
        %v1245 = vrot.slane %v832, 1
        %v1246 = vrot.slane %v816, 1
        %v1247 = vsel %vm1140, %v1245, %v1246
        %v1248 = vrot.slane %v833, 1
        %v1249 = vrot.slane %v817, 1
        %v1250 = vsel %vm1140, %v1248, %v1249
        %v1251 = vrot.slane %v834, 1
        %v1252 = vrot.slane %v818, 1
        %v1253 = vsel %vm1140, %v1251, %v1252
        %v1254 = vrot.slane %v835, 1
        %v1255 = vrot.slane %v819, 1
        %v1256 = vsel %vm1140, %v1254, %v1255
        %v1258 = vrot.slane %v985, 1
        %v1259 = vrot.slane %v967, 1
        %v1260 = vsel %vm1140, %v1258, %v1259
        %v1262 = vrot.slane %v1131, 1
        %v1263 = vrot.slane %v1115, 1
        %v1264 = vsel %vm1140, %v1262, %v1263
        %1265 = vrot.lane.b32.xlu0 %v1143, 8
        %v1266 = vpop.permute.xlu0 %1265
        %1267 = vrot.lane.b32.xlu0 %v1146, 8
        %v1268 = vpop.permute.xlu0 %1267
        %1269 = vrot.lane.b32.xlu0 %v1149, 8
        %v1270 = vpop.permute.xlu0 %1269
        %1271 = vrot.lane.b32.xlu0 %v1152, 8
        %v1272 = vpop.permute.xlu0 %1271
        %1273 = vrot.lane.b32.xlu0 %v1155, 8
        %v1274 = vpop.permute.xlu0 %1273
        %1275 = vrot.lane.b32.xlu0 %v1158, 8
        %v1276 = vpop.permute.xlu0 %1275
        %1277 = vrot.lane.b32.xlu0 %v1161, 8
        %v1278 = vpop.permute.xlu0 %1277
        %1279 = vrot.lane.b32.xlu0 %v1164, 8
        %v1280 = vpop.permute.xlu0 %1279
        %1289 = vrot.lane.b32.xlu0 %v1143, 16
        %v1290 = vpop.permute.xlu0 %1289
        %1291 = vrot.lane.b32.xlu0 %v1174, 16
        %v1292 = vpop.permute.xlu0 %1291
        %1293 = vrot.lane.b32.xlu0 %v1177, 16
        %v1294 = vpop.permute.xlu0 %1293
        %1295 = vrot.lane.b32.xlu0 %v1180, 16
        %v1296 = vpop.permute.xlu0 %1295
        %1297 = vrot.lane.b32.xlu0 %v1183, 16
        %v1298 = vpop.permute.xlu0 %1297
        %1299 = vrot.lane.b32.xlu0 %v1186, 16
        %v1300 = vpop.permute.xlu0 %1299
        %1301 = vrot.lane.b32.xlu0 %v1189, 16
        %v1302 = vpop.permute.xlu0 %1301
        %1303 = vrot.lane.b32.xlu0 %v1192, 16
        %v1304 = vpop.permute.xlu0 %1303
        %1313 = vrot.lane.b32.xlu0 %v828, 24
        %v1314 = vpop.permute.xlu0 %1313
        %1315 = vrot.lane.b32.xlu0 %v829, 24
        %v1316 = vpop.permute.xlu0 %1315
        %1317 = vrot.lane.b32.xlu0 %v830, 24
        %v1318 = vpop.permute.xlu0 %1317
        %1319 = vrot.lane.b32.xlu0 %v831, 24
        %v1320 = vpop.permute.xlu0 %1319
        %1321 = vrot.lane.b32.xlu0 %v832, 24
        %v1322 = vpop.permute.xlu0 %1321
        %1323 = vrot.lane.b32.xlu0 %v833, 24
        %v1324 = vpop.permute.xlu0 %1323
        %1325 = vrot.lane.b32.xlu0 %v834, 24
        %v1326 = vpop.permute.xlu0 %1325
        %1327 = vrot.lane.b32.xlu0 %v835, 24
        %v1328 = vpop.permute.xlu0 %1327
        %1337 = vrot.lane.b32.xlu0 %v1203, 32
        %v1338 = vpop.permute.xlu0 %1337
        %1339 = vrot.lane.b32.xlu0 %v1206, 32
        %v1340 = vpop.permute.xlu0 %1339
        %1341 = vrot.lane.b32.xlu0 %v1209, 32
        %v1342 = vpop.permute.xlu0 %1341
        %1343 = vrot.lane.b32.xlu0 %v1212, 32
        %v1344 = vpop.permute.xlu0 %1343
        %1345 = vrot.lane.b32.xlu0 %v1215, 32
        %v1346 = vpop.permute.xlu0 %1345
        %1347 = vrot.lane.b32.xlu0 %v1218, 32
        %v1348 = vpop.permute.xlu0 %1347
        %1349 = vrot.lane.b32.xlu0 %v1221, 32
        %v1350 = vpop.permute.xlu0 %1349
        %1351 = vrot.lane.b32.xlu0 %v1224, 32
        %v1352 = vpop.permute.xlu0 %1351
        %1361 = vrot.lane.b32.xlu0 %v1235, 40
        %v1362 = vpop.permute.xlu0 %1361
        %1363 = vrot.lane.b32.xlu0 %v1238, 40
        %v1364 = vpop.permute.xlu0 %1363
        %1365 = vrot.lane.b32.xlu0 %v1241, 40
        %v1366 = vpop.permute.xlu0 %1365
        %1367 = vrot.lane.b32.xlu0 %v1244, 40
        %v1368 = vpop.permute.xlu0 %1367
        %1369 = vrot.lane.b32.xlu0 %v1247, 40
        %v1370 = vpop.permute.xlu0 %1369
        %1371 = vrot.lane.b32.xlu0 %v1250, 40
        %v1372 = vpop.permute.xlu0 %1371
        %1373 = vrot.lane.b32.xlu0 %v1253, 40
        %v1374 = vpop.permute.xlu0 %1373
        %1375 = vrot.lane.b32.xlu0 %v1256, 40
        %v1376 = vpop.permute.xlu0 %1375
        %1385 = vrot.lane.b32.xlu0 %v1124, 48
        %v1386 = vpop.permute.xlu0 %1385
        %1387 = vrot.lane.b32.xlu0 %v1125, 48
        %v1388 = vpop.permute.xlu0 %1387
        %1389 = vrot.lane.b32.xlu0 %v1126, 48
        %v1390 = vpop.permute.xlu0 %1389
        %1391 = vrot.lane.b32.xlu0 %v1127, 48
        %v1392 = vpop.permute.xlu0 %1391
        %1393 = vrot.lane.b32.xlu0 %v1128, 48
        %v1394 = vpop.permute.xlu0 %1393
        %1395 = vrot.lane.b32.xlu0 %v1129, 48
        %v1396 = vpop.permute.xlu0 %1395
        %1397 = vrot.lane.b32.xlu0 %v1130, 48
        %v1398 = vpop.permute.xlu0 %1397
        %1399 = vrot.lane.b32.xlu0 %v1131, 48
        %v1400 = vpop.permute.xlu0 %1399
        %1409 = vrot.lane.b32.xlu0 %v1146, 56
        %v1410 = vpop.permute.xlu0 %1409
        %1411 = vrot.lane.b32.xlu0 %v1149, 56
        %v1412 = vpop.permute.xlu0 %1411
        %1413 = vrot.lane.b32.xlu0 %v1152, 56
        %v1414 = vpop.permute.xlu0 %1413
        %1415 = vrot.lane.b32.xlu0 %v1155, 56
        %v1416 = vpop.permute.xlu0 %1415
        %1417 = vrot.lane.b32.xlu0 %v1158, 56
        %v1418 = vpop.permute.xlu0 %1417
        %1419 = vrot.lane.b32.xlu0 %v1161, 56
        %v1420 = vpop.permute.xlu0 %1419
        %1421 = vrot.lane.b32.xlu0 %v1164, 56
        %v1422 = vpop.permute.xlu0 %1421
        %1423 = vrot.lane.b32.xlu0 %v1260, 56
        %v1424 = vpop.permute.xlu0 %1423
        %1433 = vrot.lane.b32.xlu0 %v1174, 64
        %v1434 = vpop.permute.xlu0 %1433
        %1435 = vrot.lane.b32.xlu0 %v1177, 64
        %v1436 = vpop.permute.xlu0 %1435
        %1437 = vrot.lane.b32.xlu0 %v1180, 64
        %v1438 = vpop.permute.xlu0 %1437
        %1439 = vrot.lane.b32.xlu0 %v1183, 64
        %v1440 = vpop.permute.xlu0 %1439
        %1441 = vrot.lane.b32.xlu0 %v1186, 64
        %v1442 = vpop.permute.xlu0 %1441
        %1443 = vrot.lane.b32.xlu0 %v1189, 64
        %v1444 = vpop.permute.xlu0 %1443
        %1445 = vrot.lane.b32.xlu0 %v1192, 64
        %v1446 = vpop.permute.xlu0 %1445
        %1447 = vrot.lane.b32.xlu0 %v1264, 64
        %v1448 = vpop.permute.xlu0 %1447
        %vm1457 = vcmask 64512
        %v1458 = vsel %vm1457, %v977, %v1266
        %v1459 = vsel %vm1457, %v1124, %v1268
        %v1460 = vsel %vm1457, %v1125, %v1270
        %v1461 = vsel %vm1457, %v1126, %v1272
        %v1462 = vsel %vm1457, %v1127, %v1274
        %v1463 = vsel %vm1457, %v1128, %v1276
        %v1464 = vsel %vm1457, %v1129, %v1278
        %v1465 = vsel %vm1457, %v1130, %v1280
        %vm1466 = vcmask 130048
        %v1467 = vsel %vm1466, %v1458, %v1290
        %v1468 = vsel %vm1466, %v1459, %v1292
        %v1469 = vsel %vm1466, %v1460, %v1294
        %v1470 = vsel %vm1466, %v1461, %v1296
        %v1471 = vsel %vm1466, %v1462, %v1298
        %v1472 = vsel %vm1466, %v1463, %v1300
        %v1473 = vsel %vm1466, %v1464, %v1302
        %v1474 = vsel %vm1466, %v1465, %v1304
        %vm1475 = vcmask 195584
        %v1476 = vsel %vm1475, %v1467, %v1314
        %v1477 = vsel %vm1475, %v1468, %v1316
        %v1478 = vsel %vm1475, %v1469, %v1318
        %v1479 = vsel %vm1475, %v1470, %v1320
        %v1480 = vsel %vm1475, %v1471, %v1322
        %v1481 = vsel %vm1475, %v1472, %v1324
        %v1482 = vsel %vm1475, %v1473, %v1326
        %v1483 = vsel %vm1475, %v1474, %v1328
        %vm1484 = vcmask 261120
        %v1485 = vsel %vm1484, %v1476, %v1338
        %v1486 = vsel %vm1484, %v1477, %v1340
        %v1487 = vsel %vm1484, %v1478, %v1342
        %v1488 = vsel %vm1484, %v1479, %v1344
        %v1489 = vsel %vm1484, %v1480, %v1346
        %v1490 = vsel %vm1484, %v1481, %v1348
        %v1491 = vsel %vm1484, %v1482, %v1350
        %v1492 = vsel %vm1484, %v1483, %v1352
        %vm1493 = vcmask 326656
        %v1494 = vsel %vm1493, %v1485, %v1362
        %v1495 = vsel %vm1493, %v1486, %v1364
        %v1496 = vsel %vm1493, %v1487, %v1366
        %v1497 = vsel %vm1493, %v1488, %v1368
        %v1498 = vsel %vm1493, %v1489, %v1370
        %v1499 = vsel %vm1493, %v1490, %v1372
        %v1500 = vsel %vm1493, %v1491, %v1374
        %v1501 = vsel %vm1493, %v1492, %v1376
        %vm1502 = vcmask 392192
        %v1503 = vsel %vm1502, %v1494, %v1386
        %v1504 = vsel %vm1502, %v1495, %v1388
        %v1505 = vsel %vm1502, %v1496, %v1390
        %v1506 = vsel %vm1502, %v1497, %v1392
        %v1507 = vsel %vm1502, %v1498, %v1394
        %v1508 = vsel %vm1502, %v1499, %v1396
        %v1509 = vsel %vm1502, %v1500, %v1398
        %v1510 = vsel %vm1502, %v1501, %v1400
        %vm1511 = vcmask 457728
        %v1512 = vsel %vm1511, %v1503, %v1410
        %v1513 = vsel %vm1511, %v1504, %v1412
        %v1514 = vsel %vm1511, %v1505, %v1414
        %v1515 = vsel %vm1511, %v1506, %v1416
        %v1516 = vsel %vm1511, %v1507, %v1418
        %v1517 = vsel %vm1511, %v1508, %v1420
        %v1518 = vsel %vm1511, %v1509, %v1422
        %v1519 = vsel %vm1511, %v1510, %v1424
        %vm1520 = vcmask 523264
        %v1521 = vsel %vm1520, %v1512, %v1434
        %v1522 = vsel %vm1520, %v1513, %v1436
        %v1523 = vsel %vm1520, %v1514, %v1438
        %v1524 = vsel %vm1520, %v1515, %v1440
        %v1525 = vsel %vm1520, %v1516, %v1442
        %v1526 = vsel %vm1520, %v1517, %v1444
        %v1527 = vsel %vm1520, %v1518, %v1446
        %v1528 = vsel %vm1520, %v1519, %v1448
        %v1529 = vpack.c.bf16 %v1522, %v1521
        %v1530 = vpack.c.bf16 %v1524, %v1523
        %v1531 = vpack.c.bf16 %v1526, %v1525
        %v1532 = vpack.c.bf16 %v1528, %v1527
        %v1533 = vld [vmem:[%s3] sm:$0xf]
        %v1534 = vld [vmem:[%s3 + $0x4] sm:$0xf]
        %v1535 = vld [vmem:[%s3 + $0x8] sm:$0xf]
        %v1536 = vld [vmem:[%s3 + $0xc] sm:$0xf]
        %v1537 = vld [vmem:[%s3 + $0x10] sm:$0xf]
        %v1538 = vld [vmem:[%s3 + $0x14] sm:$0xf]
        %v1539 = vld [vmem:[%s3 + $0x18] sm:$0xf]
        %v1540 = vld [vmem:[%s3 + $0x1c] sm:$0xf]
        %v1541 = vld [vmem:[%s3 + $0x20] sm:$0xf]
        %v1542 = vld [vmem:[%s4] sm:$0x1]
        %v1544 = vlaneseq
        %v1545 = vshrl.u32 %v1544, 7
        %v1546 = vsub.s32 0, %v1545
        %v1547 = vrot.slane %v1542, %v1546
        %v1558 = vunpack.c.l.b16 %v1533
        %v1559 = vunpack.c.l.b16 %v1534
        %v1560 = vunpack.c.l.b16 %v1535
        %v1561 = vunpack.c.l.b16 %v1536
        %v1562 = vunpack.c.l.b16 %v1537
        %v1563 = vunpack.c.l.b16 %v1538
        %v1564 = vunpack.c.l.b16 %v1539
        %v1565 = vunpack.c.l.b16 %v1540
        %v1566 = vunpack.c.l.b16 %v1541
        %v1567 = vpack.c.b16 %v1559, %v1558
        %v1568 = vpack.c.b16 %v1561, %v1560
        %v1569 = vpack.c.b16 %v1563, %v1562
        %v1570 = vpack.c.b16 %v1565, %v1564
        %v1571 = vpack.c.b16 %v1566, %v1566
        %vm1576 = vcmask 588800
        %v1578 = vsel %vm1576, %v1529, 0
        %v1581 = vsel %vm1576, %v1530, 0
        %v1584 = vsel %vm1576, %v1531, 0
        %v1587 = vsel %vm1576, %v1532, 0
        %vm1589 = vcmask 1043456
        %v1591 = vsel %vm1589, %v1571, 0
        %1593 = vmatprep.subr.bf16.mxu0 0
        %1594 = vmatpush1.bf16.msra.mxu0 0
        %1595 = vmatprep.subr.bf16.mxu0 0
        %1596 = vmatpush1.bf16.msra.mxu0 0
        %1597 = vmatprep.subr.bf16.mxu0 0
        %1598 = vmatpush1.bf16.msra.mxu0 0
        %1599 = vmatprep.subr.bf16.mxu0 0
        %1600 = vmatpush1.bf16.msra.mxu0 %v1591
        %1601 = vmatprep.subr.bf16.mxu0 0
        %1602 = vmatpush1.bf16.msra.mxu0 %v1570
        %1603 = vmatprep.subr.bf16.mxu0 0
        %1604 = vmatpush1.bf16.msra.mxu0 %v1569
        %1605 = vmatprep.subr.bf16.mxu0 0
        %1606 = vmatpush1.bf16.msra.mxu0 %v1568
        %1607 = vmatprep.subr.bf16.mxu0 0
        %1608 = vmatpush1.bf16.msra.mxu0 %v1567
        %1609 = vmatprep.subr.bf16.mxu0 0
        %1610 = vmatpush2.bf16.msra.mxu0 0
        %1611 = vmatprep.subr.bf16.mxu0 0
        %1612 = vmatpush2.bf16.msra.mxu0 0
        %1613 = vmatprep.subr.bf16.mxu0 0
        %1614 = vmatpush2.bf16.msra.mxu0 0
        %1615 = vmatprep.subr.bf16.mxu0 0
        %1616 = vmatpush2.bf16.msra.mxu0 0
        %1617 = vmatprep.subr.bf16.mxu0 0
        %1618 = vmatpush2.bf16.msra.mxu0 0
        %1619 = vmatprep.subr.bf16.mxu0 0
        %1620 = vmatpush2.bf16.msra.mxu0 0
        %1621 = vmatprep.subr.bf16.mxu0 0
        %1622 = vmatpush2.bf16.msra.mxu0 0
        %1623 = vmatprep.subr.bf16.mxu0 0
        %1624 = vmatpush2.bf16.msra.mxu0 0
        %1625 = vmatprep.mubr.bf16.mxu0 0
        %1626 = vmatmul.mubr.bf16.gmra.mxu0 %v1578
        %v1627 = vpop.f32.mrf.mxu0
        %v1628 = vadd.f32 %v1547, %v1627
        %v1629 = vpop.f32.mrf.mxu0
        %v1630 = vpop.f32.mrf.mxu0
        %v1631 = vadd.f32 %v1547, %v1630
        %v1632 = vpop.f32.mrf.mxu0
        %1633 = vmatprep.mubr.bf16.mxu0 0
        %1634 = vmatmul.mubr.bf16.gmra.mxu0 %v1581
        %v1635 = vpop.f32.mrf.mxu0
        %v1636 = vadd.f32 %v1547, %v1635
        %v1637 = vpop.f32.mrf.mxu0
        %v1638 = vpop.f32.mrf.mxu0
        %v1639 = vadd.f32 %v1547, %v1638
        %v1640 = vpop.f32.mrf.mxu0
        %1641 = vmatprep.mubr.bf16.mxu0 0
        %1642 = vmatmul.mubr.bf16.gmra.mxu0 %v1584
        %v1643 = vpop.f32.mrf.mxu0
        %v1644 = vadd.f32 %v1547, %v1643
        %v1645 = vpop.f32.mrf.mxu0
        %v1646 = vpop.f32.mrf.mxu0
        %v1647 = vadd.f32 %v1547, %v1646
        %v1648 = vpop.f32.mrf.mxu0
        %1649 = vmatprep.mubr.bf16.mxu0 0
        %1650 = vmatmul.mubr.bf16.gmra.mxu0 %v1587
        %v1651 = vpop.f32.mrf.mxu0
        %v1652 = vadd.f32 %v1547, %v1651
        %v1653 = vpop.f32.mrf.mxu0
        %v1654 = vpop.f32.mrf.mxu0
        %v1655 = vadd.f32 %v1547, %v1654
        %v1656 = vpop.f32.mrf.mxu0
        %1657 = vdwg.mxu0
        %v1658 = vmax.f32 %v1628, 0.0
        %v1659 = vmax.f32 %v1631, 0.0
        %v1660 = vmax.f32 %v1636, 0.0
        %v1661 = vmax.f32 %v1639, 0.0
        %v1662 = vmax.f32 %v1644, 0.0
        %v1663 = vmax.f32 %v1647, 0.0
        %v1664 = vmax.f32 %v1652, 0.0
        %v1665 = vmax.f32 %v1655, 0.0
        %v1674 = vrot.slane %v1658, 7
        %v1675 = vrot.slane %v1659, 7
        %v1676 = vrot.slane %v1660, 7
        %v1677 = vrot.slane %v1661, 7
        %v1678 = vrot.slane %v1662, 7
        %v1679 = vrot.slane %v1663, 7
        %v1680 = vrot.slane %v1664, 7
        %v1681 = vrot.slane %v1665, 7
        %v1690 = vsel %vm681, 0.0, %v1674
        %v1691 = vsel %vm681, 0.0, %v1675
        %v1692 = vsel %vm681, 0.0, %v1676
        %v1693 = vsel %vm681, 0.0, %v1677
        %v1694 = vsel %vm681, 0.0, %v1678
        %v1695 = vsel %vm681, 0.0, %v1679
        %v1696 = vsel %vm681, 0.0, %v1680
        %v1697 = vsel %vm681, 0.0, %v1681
        %v1698 = vsel %vm681, %v959, 0.0
        %v1699 = vsel %vm681, %v1674, 0.0
        %v1700 = vsel %vm681, %v1675, 0.0
        %v1701 = vsel %vm681, %v1676, 0.0
        %v1702 = vsel %vm681, %v1677, 0.0
        %v1703 = vsel %vm681, %v1678, 0.0
        %v1704 = vsel %vm681, %v1679, 0.0
        %v1705 = vsel %vm681, %v1680, 0.0
        %v1706 = vsel %vm681, %v1681, 0.0
        %v1722 = vrot.slane %v1698, 1
        %v1723 = vsel %vm1140, %v1141, %v1722
        %v1724 = vrot.slane %v1690, 1
        %v1725 = vrot.slane %v1699, 1
        %v1726 = vsel %vm1140, %v1724, %v1725
        %v1727 = vrot.slane %v1691, 1
        %v1728 = vrot.slane %v1700, 1
        %v1729 = vsel %vm1140, %v1727, %v1728
        %v1730 = vrot.slane %v1692, 1
        %v1731 = vrot.slane %v1701, 1
        %v1732 = vsel %vm1140, %v1730, %v1731
        %v1733 = vrot.slane %v1693, 1
        %v1734 = vrot.slane %v1702, 1
        %v1735 = vsel %vm1140, %v1733, %v1734
        %v1736 = vrot.slane %v1694, 1
        %v1737 = vrot.slane %v1703, 1
        %v1738 = vsel %vm1140, %v1736, %v1737
        %v1739 = vrot.slane %v1695, 1
        %v1740 = vrot.slane %v1704, 1
        %v1741 = vsel %vm1140, %v1739, %v1740
        %v1742 = vrot.slane %v1696, 1
        %v1743 = vrot.slane %v1705, 1
        %v1744 = vsel %vm1140, %v1742, %v1743
        %v1745 = vrot.slane %v977, 2
        %v1746 = vrot.slane %v1698, 2
        %v1747 = vsel %vm578, %v1745, %v1746
        %v1748 = vrot.slane %v1690, 2
        %v1749 = vrot.slane %v1699, 2
        %v1750 = vsel %vm578, %v1748, %v1749
        %v1751 = vrot.slane %v1691, 2
        %v1752 = vrot.slane %v1700, 2
        %v1753 = vsel %vm578, %v1751, %v1752
        %v1754 = vrot.slane %v1692, 2
        %v1755 = vrot.slane %v1701, 2
        %v1756 = vsel %vm578, %v1754, %v1755
        %v1757 = vrot.slane %v1693, 2
        %v1758 = vrot.slane %v1702, 2
        %v1759 = vsel %vm578, %v1757, %v1758
        %v1760 = vrot.slane %v1694, 2
        %v1761 = vrot.slane %v1703, 2
        %v1762 = vsel %vm578, %v1760, %v1761
        %v1763 = vrot.slane %v1695, 2
        %v1764 = vrot.slane %v1704, 2
        %v1765 = vsel %vm578, %v1763, %v1764
        %v1766 = vrot.slane %v1696, 2
        %v1767 = vrot.slane %v1705, 2
        %v1768 = vsel %vm578, %v1766, %v1767
        %v1771 = vrot.slane %v1697, 1
        %v1772 = vrot.slane %v1706, 1
        %v1773 = vsel %vm1140, %v1771, %v1772
        %v1774 = vrot.slane %v1697, 2
        %v1775 = vrot.slane %v1706, 2
        %v1776 = vsel %vm578, %v1774, %v1775
        %1785 = vrot.lane.b32.xlu0 %v1723, 16
        %v1786 = vpop.permute.xlu0 %1785
        %1787 = vrot.lane.b32.xlu0 %v1726, 16
        %v1788 = vpop.permute.xlu0 %1787
        %1789 = vrot.lane.b32.xlu0 %v1729, 16
        %v1790 = vpop.permute.xlu0 %1789
        %1791 = vrot.lane.b32.xlu0 %v1732, 16
        %v1792 = vpop.permute.xlu0 %1791
        %1793 = vrot.lane.b32.xlu0 %v1735, 16
        %v1794 = vpop.permute.xlu0 %1793
        %1795 = vrot.lane.b32.xlu0 %v1738, 16
        %v1796 = vpop.permute.xlu0 %1795
        %1797 = vrot.lane.b32.xlu0 %v1741, 16
        %v1798 = vpop.permute.xlu0 %1797
        %1799 = vrot.lane.b32.xlu0 %v1744, 16
        %v1800 = vpop.permute.xlu0 %1799
        %1809 = vrot.lane.b32.xlu0 %v1747, 32
        %v1810 = vpop.permute.xlu0 %1809
        %1811 = vrot.lane.b32.xlu0 %v1750, 32
        %v1812 = vpop.permute.xlu0 %1811
        %1813 = vrot.lane.b32.xlu0 %v1753, 32
        %v1814 = vpop.permute.xlu0 %1813
        %1815 = vrot.lane.b32.xlu0 %v1756, 32
        %v1816 = vpop.permute.xlu0 %1815
        %1817 = vrot.lane.b32.xlu0 %v1759, 32
        %v1818 = vpop.permute.xlu0 %1817
        %1819 = vrot.lane.b32.xlu0 %v1762, 32
        %v1820 = vpop.permute.xlu0 %1819
        %1821 = vrot.lane.b32.xlu0 %v1765, 32
        %v1822 = vpop.permute.xlu0 %1821
        %1823 = vrot.lane.b32.xlu0 %v1768, 32
        %v1824 = vpop.permute.xlu0 %1823
        %1833 = vrot.lane.b32.xlu0 %v1690, 48
        %v1834 = vpop.permute.xlu0 %1833
        %1835 = vrot.lane.b32.xlu0 %v1691, 48
        %v1836 = vpop.permute.xlu0 %1835
        %1837 = vrot.lane.b32.xlu0 %v1692, 48
        %v1838 = vpop.permute.xlu0 %1837
        %1839 = vrot.lane.b32.xlu0 %v1693, 48
        %v1840 = vpop.permute.xlu0 %1839
        %1841 = vrot.lane.b32.xlu0 %v1694, 48
        %v1842 = vpop.permute.xlu0 %1841
        %1843 = vrot.lane.b32.xlu0 %v1695, 48
        %v1844 = vpop.permute.xlu0 %1843
        %1845 = vrot.lane.b32.xlu0 %v1696, 48
        %v1846 = vpop.permute.xlu0 %1845
        %1847 = vrot.lane.b32.xlu0 %v1697, 48
        %v1848 = vpop.permute.xlu0 %1847
        %1857 = vrot.lane.b32.xlu0 %v1726, 64
        %v1858 = vpop.permute.xlu0 %1857
        %1859 = vrot.lane.b32.xlu0 %v1729, 64
        %v1860 = vpop.permute.xlu0 %1859
        %1861 = vrot.lane.b32.xlu0 %v1732, 64
        %v1862 = vpop.permute.xlu0 %1861
        %1863 = vrot.lane.b32.xlu0 %v1735, 64
        %v1864 = vpop.permute.xlu0 %1863
        %1865 = vrot.lane.b32.xlu0 %v1738, 64
        %v1866 = vpop.permute.xlu0 %1865
        %1867 = vrot.lane.b32.xlu0 %v1741, 64
        %v1868 = vpop.permute.xlu0 %1867
        %1869 = vrot.lane.b32.xlu0 %v1744, 64
        %v1870 = vpop.permute.xlu0 %1869
        %1871 = vrot.lane.b32.xlu0 %v1773, 64
        %v1872 = vpop.permute.xlu0 %1871
        %1881 = vrot.lane.b32.xlu0 %v1750, 80
        %v1882 = vpop.permute.xlu0 %1881
        %1883 = vrot.lane.b32.xlu0 %v1753, 80
        %v1884 = vpop.permute.xlu0 %1883
        %1885 = vrot.lane.b32.xlu0 %v1756, 80
        %v1886 = vpop.permute.xlu0 %1885
        %1887 = vrot.lane.b32.xlu0 %v1759, 80
        %v1888 = vpop.permute.xlu0 %1887
        %1889 = vrot.lane.b32.xlu0 %v1762, 80
        %v1890 = vpop.permute.xlu0 %1889
        %1891 = vrot.lane.b32.xlu0 %v1765, 80
        %v1892 = vpop.permute.xlu0 %1891
        %1893 = vrot.lane.b32.xlu0 %v1768, 80
        %v1894 = vpop.permute.xlu0 %1893
        %1895 = vrot.lane.b32.xlu0 %v1776, 80
        %v1896 = vpop.permute.xlu0 %1895
        %1905 = vrot.lane.b32.xlu0 %v1691, 96
        %v1906 = vpop.permute.xlu0 %1905
        %1907 = vrot.lane.b32.xlu0 %v1692, 96
        %v1908 = vpop.permute.xlu0 %1907
        %1909 = vrot.lane.b32.xlu0 %v1693, 96
        %v1910 = vpop.permute.xlu0 %1909
        %1911 = vrot.lane.b32.xlu0 %v1694, 96
        %v1912 = vpop.permute.xlu0 %1911
        %1913 = vrot.lane.b32.xlu0 %v1695, 96
        %v1914 = vpop.permute.xlu0 %1913
        %1915 = vrot.lane.b32.xlu0 %v1696, 96
        %v1916 = vpop.permute.xlu0 %1915
        %1917 = vrot.lane.b32.xlu0 %v1697, 96
        %v1918 = vpop.permute.xlu0 %1917
        %1919 = vrot.lane.b32.xlu0 %v977, 96
        %v1920 = vpop.permute.xlu0 %1919
        %1929 = vrot.lane.b32.xlu0 %v1729, 112
        %v1930 = vpop.permute.xlu0 %1929
        %1931 = vrot.lane.b32.xlu0 %v1732, 112
        %v1932 = vpop.permute.xlu0 %1931
        %1933 = vrot.lane.b32.xlu0 %v1735, 112
        %v1934 = vpop.permute.xlu0 %1933
        %1935 = vrot.lane.b32.xlu0 %v1738, 112
        %v1936 = vpop.permute.xlu0 %1935
        %1937 = vrot.lane.b32.xlu0 %v1741, 112
        %v1938 = vpop.permute.xlu0 %1937
        %1939 = vrot.lane.b32.xlu0 %v1744, 112
        %v1940 = vpop.permute.xlu0 %1939
        %1941 = vrot.lane.b32.xlu0 %v1773, 112
        %v1942 = vpop.permute.xlu0 %1941
        %1943 = vrot.lane.b32.xlu0 %v1723, 112
        %v1944 = vpop.permute.xlu0 %1943
        %v1953 = vsel %vm1466, %v977, %v1786
        %v1954 = vsel %vm1466, %v1690, %v1788
        %v1955 = vsel %vm1466, %v1691, %v1790
        %v1956 = vsel %vm1466, %v1692, %v1792
        %v1957 = vsel %vm1466, %v1693, %v1794
        %v1958 = vsel %vm1466, %v1694, %v1796
        %v1959 = vsel %vm1466, %v1695, %v1798
        %v1960 = vsel %vm1466, %v1696, %v1800
        %v1961 = vsel %vm1484, %v1953, %v1810
        %v1962 = vsel %vm1484, %v1954, %v1812
        %v1963 = vsel %vm1484, %v1955, %v1814
        %v1964 = vsel %vm1484, %v1956, %v1816
        %v1965 = vsel %vm1484, %v1957, %v1818
        %v1966 = vsel %vm1484, %v1958, %v1820
        %v1967 = vsel %vm1484, %v1959, %v1822
        %v1968 = vsel %vm1484, %v1960, %v1824
        %v1969 = vsel %vm1502, %v1961, %v1834
        %v1970 = vsel %vm1502, %v1962, %v1836
        %v1971 = vsel %vm1502, %v1963, %v1838
        %v1972 = vsel %vm1502, %v1964, %v1840
        %v1973 = vsel %vm1502, %v1965, %v1842
        %v1974 = vsel %vm1502, %v1966, %v1844
        %v1975 = vsel %vm1502, %v1967, %v1846
        %v1976 = vsel %vm1502, %v1968, %v1848
        %v1977 = vsel %vm1520, %v1969, %v1858
        %v1978 = vsel %vm1520, %v1970, %v1860
        %v1979 = vsel %vm1520, %v1971, %v1862
        %v1980 = vsel %vm1520, %v1972, %v1864
        %v1981 = vsel %vm1520, %v1973, %v1866
        %v1982 = vsel %vm1520, %v1974, %v1868
        %v1983 = vsel %vm1520, %v1975, %v1870
        %v1984 = vsel %vm1520, %v1976, %v1872
        %vm1985 = vcmask 654336
        %v1986 = vsel %vm1985, %v1977, %v1882
        %v1987 = vsel %vm1985, %v1978, %v1884
        %v1988 = vsel %vm1985, %v1979, %v1886
        %v1989 = vsel %vm1985, %v1980, %v1888
        %v1990 = vsel %vm1985, %v1981, %v1890
        %v1991 = vsel %vm1985, %v1982, %v1892
        %v1992 = vsel %vm1985, %v1983, %v1894
        %v1993 = vsel %vm1985, %v1984, %v1896
        %vm1994 = vcmask 785408
        %v1995 = vsel %vm1994, %v1986, %v1906
        %v1996 = vsel %vm1994, %v1987, %v1908
        %v1997 = vsel %vm1994, %v1988, %v1910
        %v1998 = vsel %vm1994, %v1989, %v1912
        %v1999 = vsel %vm1994, %v1990, %v1914
        %v2000 = vsel %vm1994, %v1991, %v1916
        %v2001 = vsel %vm1994, %v1992, %v1918
        %v2002 = vsel %vm1994, %v1993, %v1920
        %vm2003 = vcmask 916480
        %v2004 = vsel %vm2003, %v1995, %v1930
        %v2005 = vsel %vm2003, %v1996, %v1932
        %v2006 = vsel %vm2003, %v1997, %v1934
        %v2007 = vsel %vm2003, %v1998, %v1936
        %v2008 = vsel %vm2003, %v1999, %v1938
        %v2009 = vsel %vm2003, %v2000, %v1940
        %v2010 = vsel %vm2003, %v2001, %v1942
        %v2011 = vsel %vm2003, %v2002, %v1944
        %v2012 = vpack.c.bf16 %v2005, %v2004
        %v2013 = vpack.c.bf16 %v1756, %v1753
        %v2014 = vpack.c.bf16 %v2007, %v2006
        %v2015 = vpack.c.bf16 %v1762, %v1759
        %v2016 = vpack.c.bf16 %v2009, %v2008
        %v2017 = vpack.c.bf16 %v1768, %v1765
        %v2018 = vpack.c.bf16 %v2011, %v2010
        %v2019 = vpack.c.bf16 %v1747, %v1776
        %v2020 = vld [vmem:[%s5] sm:$0xf]
        %v2021 = vld [vmem:[%s5 + $0x4] sm:$0xf]
        %v2022 = vld [vmem:[%s5 + $0x8] sm:$0xf]
        %v2023 = vld [vmem:[%s5 + $0xc] sm:$0xf]
        %v2024 = vld [vmem:[%s5 + $0x10] sm:$0xf]
        %v2025 = vld [vmem:[%s5 + $0x14] sm:$0xf]
        %v2026 = vld [vmem:[%s5 + $0x18] sm:$0xf]
        %v2027 = vld [vmem:[%s5 + $0x1c] sm:$0xf]
        %v2028 = vld [vmem:[%s5 + $0x20] sm:$0xf]
        %v2029 = vld [vmem:[%s5 + $0x24] sm:$0xf]
        %v2030 = vld [vmem:[%s5 + $0x28] sm:$0xf]
        %v2031 = vld [vmem:[%s5 + $0x2c] sm:$0xf]
        %v2032 = vld [vmem:[%s5 + $0x30] sm:$0xf]
        %v2033 = vld [vmem:[%s5 + $0x34] sm:$0xf]
        %v2034 = vld [vmem:[%s5 + $0x38] sm:$0xf]
        %v2035 = vld [vmem:[%s5 + $0x3c] sm:$0xf]
        %v2036 = vld [vmem:[%s5 + $0x40] sm:$0xf]
        %v2037 = vld [vmem:[%s5 + $0x44] sm:$0xf]
        %v2038 = vld [vmem:[%s6] sm:$0x1]
        %v2040 = vlaneseq
        %v2041 = vshrl.u32 %v2040, 7
        %v2042 = vsub.s32 0, %v2041
        %v2043 = vrot.slane %v2038, %v2042
        %v2063 = vunpack.c.l.b16 %v2020
        %v2064 = vunpack.c.l.b16 %v2021
        %v2065 = vunpack.c.l.b16 %v2022
        %v2066 = vunpack.c.l.b16 %v2023
        %v2067 = vunpack.c.l.b16 %v2024
        %v2068 = vunpack.c.l.b16 %v2025
        %v2069 = vunpack.c.l.b16 %v2026
        %v2070 = vunpack.c.l.b16 %v2027
        %v2071 = vunpack.c.l.b16 %v2028
        %v2072 = vunpack.c.l.b16 %v2029
        %v2073 = vunpack.c.l.b16 %v2030
        %v2074 = vunpack.c.l.b16 %v2031
        %v2075 = vunpack.c.l.b16 %v2032
        %v2076 = vunpack.c.l.b16 %v2033
        %v2077 = vunpack.c.l.b16 %v2034
        %v2078 = vunpack.c.l.b16 %v2035
        %v2079 = vunpack.c.l.b16 %v2036
        %v2080 = vunpack.c.l.b16 %v2037
        %v2081 = vpack.c.b16 %v2064, %v2063
        %v2082 = vpack.c.b16 %v2066, %v2065
        %v2083 = vpack.c.b16 %v2068, %v2067
        %v2084 = vpack.c.b16 %v2070, %v2069
        %v2085 = vpack.c.b16 %v2072, %v2071
        %v2086 = vpack.c.b16 %v2074, %v2073
        %v2087 = vpack.c.b16 %v2076, %v2075
        %v2088 = vpack.c.b16 %v2078, %v2077
        %v2089 = vpack.c.b16 %v2080, %v2079
        %v2100 = vsel %vm1466, %v2013, 0
        %v2103 = vsel %vm1466, %v2015, 0
        %v2106 = vsel %vm1466, %v2017, 0
        %v2109 = vsel %vm1466, %v2019, 0
        %2111 = vmatprep.subr.bf16.mxu0 0
        %2112 = vmatpush1.bf16.msra.mxu0 %v2088
        %2113 = vmatprep.subr.bf16.mxu0 0
        %2114 = vmatpush1.bf16.msra.mxu0 %v2087
        %2115 = vmatprep.subr.bf16.mxu0 0
        %2116 = vmatpush1.bf16.msra.mxu0 %v2086
        %2117 = vmatprep.subr.bf16.mxu0 0
        %2118 = vmatpush1.bf16.msra.mxu0 %v2085
        %2119 = vmatprep.subr.bf16.mxu0 0
        %2120 = vmatpush1.bf16.msra.mxu0 %v2084
        %2121 = vmatprep.subr.bf16.mxu0 0
        %2122 = vmatpush1.bf16.msra.mxu0 %v2083
        %2123 = vmatprep.subr.bf16.mxu0 0
        %2124 = vmatpush1.bf16.msra.mxu0 %v2082
        %2125 = vmatprep.subr.bf16.mxu0 0
        %2126 = vmatpush1.bf16.msra.mxu0 %v2081
        %2127 = vmatprep.subr.bf16.mxu0 0
        %2128 = vmatpush2.bf16.msra.mxu0 0
        %2129 = vmatprep.subr.bf16.mxu0 0
        %2130 = vmatpush2.bf16.msra.mxu0 0
        %2131 = vmatprep.subr.bf16.mxu0 0
        %2132 = vmatpush2.bf16.msra.mxu0 0
        %2133 = vmatprep.subr.bf16.mxu0 0
        %2134 = vmatpush2.bf16.msra.mxu0 0
        %2135 = vmatprep.subr.bf16.mxu0 0
        %2136 = vmatpush2.bf16.msra.mxu0 0
        %2137 = vmatprep.subr.bf16.mxu0 0
        %2138 = vmatpush2.bf16.msra.mxu0 0
        %2139 = vmatprep.subr.bf16.mxu0 0
        %2140 = vmatpush2.bf16.msra.mxu0 0
        %2141 = vmatprep.subr.bf16.mxu0 0
        %2142 = vmatpush2.bf16.msra.mxu0 %v2089
        %2143 = vmatprep.mubr.bf16.mxu0 %v2100
        %2144 = vmatmul.mubr.bf16.gmra.mxu0 %v2012
        %v2145 = vpop.f32.mrf.mxu0
        %v2146 = vadd.f32 %v2043, %v2145
        %v2147 = vpop.f32.mrf.mxu0
        %v2148 = vpop.f32.mrf.mxu0
        %v2149 = vadd.f32 %v2043, %v2148
        %v2150 = vpop.f32.mrf.mxu0
        %2151 = vmatprep.mubr.bf16.mxu0 %v2103
        %2152 = vmatmul.mubr.bf16.gmra.mxu0 %v2014
        %v2153 = vpop.f32.mrf.mxu0
        %v2154 = vadd.f32 %v2043, %v2153
        %v2155 = vpop.f32.mrf.mxu0
        %v2156 = vpop.f32.mrf.mxu0
        %v2157 = vadd.f32 %v2043, %v2156
        %v2158 = vpop.f32.mrf.mxu0
        %2159 = vmatprep.mubr.bf16.mxu0 %v2106
        %2160 = vmatmul.mubr.bf16.gmra.mxu0 %v2016
        %v2161 = vpop.f32.mrf.mxu0
        %v2162 = vadd.f32 %v2043, %v2161
        %v2163 = vpop.f32.mrf.mxu0
        %v2164 = vpop.f32.mrf.mxu0
        %v2165 = vadd.f32 %v2043, %v2164
        %v2166 = vpop.f32.mrf.mxu0
        %2167 = vmatprep.mubr.bf16.mxu0 %v2109
        %2168 = vmatmul.mubr.bf16.gmra.mxu0 %v2018
        %v2169 = vpop.f32.mrf.mxu0
        %v2170 = vadd.f32 %v2043, %v2169
        %v2171 = vpop.f32.mrf.mxu0
        %v2172 = vpop.f32.mrf.mxu0
        %v2173 = vadd.f32 %v2043, %v2172
        %v2174 = vpop.f32.mrf.mxu0
        %2175 = vdwg.mxu0
        %v2176 = vmax.f32 %v2146, 0.0
        %v2177 = vmax.f32 %v2149, 0.0
        %v2178 = vmax.f32 %v2154, 0.0
        %v2179 = vmax.f32 %v2157, 0.0
        %v2180 = vmax.f32 %v2162, 0.0
        %v2181 = vmax.f32 %v2165, 0.0
        %v2182 = vmax.f32 %v2170, 0.0
        %v2183 = vmax.f32 %v2173, 0.0
        %v2184 = vsel %vm1484, %v2176, 0.0
        %v2185 = vsel %vm1484, %v2177, 0.0
        %v2186 = vadd.f32 %v2184, %v2185
        %v2187 = vsel %vm1484, %v2178, 0.0
        %v2188 = vadd.f32 %v2186, %v2187
        %v2189 = vsel %vm1484, %v2179, 0.0
        %v2190 = vadd.f32 %v2188, %v2189
        %v2191 = vsel %vm1484, %v2180, 0.0
        %v2192 = vadd.f32 %v2190, %v2191
        %v2193 = vsel %vm1484, %v2181, 0.0
        %v2194 = vadd.f32 %v2192, %v2193
        %v2195 = vsel %vm1484, %v2182, 0.0
        %v2196 = vadd.f32 %v2194, %v2195
        %v2197 = vsel %vm1484, %v2183, 0.0
        %v2198 = vadd.f32 %v2196, %v2197
        %v2199 = vrot.slane %v2198, 4
        %v2200 = vadd.f32 %v2198, %v2199
        %v2201 = vrot.slane %v2200, 2
        %v2202 = vadd.f32 %v2200, %v2201
        %v2203 = vrot.slane %v2202, 1
        %v2204 = vadd.f32 %v2202, %v2203
        %v2205 = vmul.f32 %v2204, 0.015625
        %v2206 = vld [vmem:[%s7] sm:$0xff]
        %v2207 = vld [vmem:[%s7 + $0x8] sm:$0xff]
        %v2208 = vld [vmem:[%s7 + $0x10] sm:$0xff]
        %v2209 = vld [vmem:[%s7 + $0x18] sm:$0xff]
        %v2210 = vld [vmem:[%s8] sm:$0x1]
        %v2212 = vsel %vm1484, %v2205, 0
        %2214 = vmatprep.subr.mxu0 0.0
        %2215 = vmatpush1.msra.mxu0 0.0
        %2216 = vmatprep.subr.mxu0 0.0
        %2217 = vmatpush1.msra.mxu0 0.0
        %2218 = vmatprep.subr.mxu0 0.0
        %2219 = vmatpush1.msra.mxu0 0.0
        %2220 = vmatprep.subr.mxu0 0.0
        %2221 = vmatpush1.msra.mxu0 0.0
        %2222 = vmatprep.subr.mxu0 0.0
        %2223 = vmatpush1.msra.mxu0 0.0
        %2224 = vmatprep.subr.mxu0 0.0
        %2225 = vmatpush1.msra.mxu0 0.0
        %2226 = vmatprep.subr.mxu0 0.0
        %2227 = vmatpush1.msra.mxu0 0.0
        %2228 = vmatprep.subr.mxu0 0.0
        %2229 = vmatpush1.msra.mxu0 0.0
        %2230 = vmatprep.subr.mxu0 0.0
        %2231 = vmatpush1.msra.mxu0 0.0
        %2232 = vmatprep.subr.mxu0 0.0
        %2233 = vmatpush1.msra.mxu0 0.0
        %2234 = vmatprep.subr.mxu0 0.0
        %2235 = vmatpush1.msra.mxu0 0.0
        %2236 = vmatprep.subr.mxu0 0.0
        %2237 = vmatpush1.msra.mxu0 0.0
        %2238 = vmatprep.subr.mxu0 0.0
        %2239 = vmatpush1.msra.mxu0 %v2209
        %2240 = vmatprep.subr.mxu0 0.0
        %2241 = vmatpush1.msra.mxu0 %v2208
        %2242 = vmatprep.subr.mxu0 0.0
        %2243 = vmatpush1.msra.mxu0 %v2207
        %2244 = vmatprep.subr.mxu0 0.0
        %2245 = vmatpush1.msra.mxu0 %v2206
        %2246 = vmatprep.subr.mxu0 0.0
        %2247 = vmatpush2.msra.mxu0 0.0
        %2248 = vmatprep.subr.mxu0 0.0
        %2249 = vmatpush2.msra.mxu0 0.0
        %2250 = vmatprep.subr.mxu0 0.0
        %2251 = vmatpush2.msra.mxu0 0.0
        %2252 = vmatprep.subr.mxu0 0.0
        %2253 = vmatpush2.msra.mxu0 0.0
        %2254 = vmatprep.subr.mxu0 0.0
        %2255 = vmatpush2.msra.mxu0 0.0
        %2256 = vmatprep.subr.mxu0 0.0
        %2257 = vmatpush2.msra.mxu0 0.0
        %2258 = vmatprep.subr.mxu0 0.0
        %2259 = vmatpush2.msra.mxu0 0.0
        %2260 = vmatprep.subr.mxu0 0.0
        %2261 = vmatpush2.msra.mxu0 0.0
        %2262 = vmatprep.subr.mxu0 0.0
        %2263 = vmatpush2.msra.mxu0 0.0
        %2264 = vmatprep.subr.mxu0 0.0
        %2265 = vmatpush2.msra.mxu0 0.0
        %2266 = vmatprep.subr.mxu0 0.0
        %2267 = vmatpush2.msra.mxu0 0.0
        %2268 = vmatprep.subr.mxu0 0.0
        %2269 = vmatpush2.msra.mxu0 0.0
        %2270 = vmatprep.subr.mxu0 0.0
        %2271 = vmatpush2.msra.mxu0 0.0
        %2272 = vmatprep.subr.mxu0 0.0
        %2273 = vmatpush2.msra.mxu0 0.0
        %2274 = vmatprep.subr.mxu0 0.0
        %2275 = vmatpush2.msra.mxu0 0.0
        %2276 = vmatprep.subr.mxu0 0.0
        %2277 = vmatpush2.msra.mxu0 0.0
        %2278 = vmatprep.mubr.f32.mxu0 0.0
        %2279 = vmatmul.mubr.f32.gmra.mxu0 %v2212
        %v2280 = vpop.f32.mrf.mxu0
        %v2281 = vadd.f32 %v2210, %v2280
        %v2282 = vpop.f32.mrf.mxu0
        %2283 = vdwg.mxu0
        %vm2284 = vcmask 73728
        %2285 = vst.msk [vmem:[%s487] sm:$0x1] %vm2284, %v2281
        %v2286 = vsel %vm2284, %v2281, -inf
        %2287 = vmax.xlane.f32.xlu0 %v2286
        %v2288 = vpop.xlane.xlu0 %2287
        %v2289 = vlaneseq
        %v2290 = vand.u32 %v2289, 127
        %vm2291 = vcmp.eq.f32.partialorder %v2281, %v2288
        %v2292 = vsel %vm2291, %v2290, 10
        %v2293 = vsel %vm2284, %v2292, 2147483647
        %v2294 = vand.u32 %v2293, 65535
        %v2295 = vshra.s32 %v2293, 16
        %v2296 = vcvt.s32.f32 %v2294
        %v2297 = vcvt.s32.f32 %v2295
        %2298 = vmin.xlane.f32.xlu0 %v2297
        %v2299 = vpop.xlane.xlu0 %2298
        %vm2300 = vcmp.eq.f32.partialorder %v2297, %v2299
        %v2301 = vsel %vm2300, %v2296, inf
        %2302 = vmin.xlane.f32.xlu0 %v2301
        %v2303 = vpop.xlane.xlu0 %2302
        %v2304 = vcvt.f32.s32 %v2303
        %v2305 = vcvt.f32.s32 %v2299
        %v2306 = vshll.u32 %v2305, 16
        %v2307 = vadd.s32 %v2306, %v2304
        %vm2308 = vcmask 0
        %2309 = vst.msk [vmem:[%s507] sm:$0x1] %vm2308, %v2307
        %2318 = vrot.lane.b32.xlu0 %v2176, 16
        %v2319 = vpop.permute.xlu0 %2318
        %2320 = vrot.lane.b32.xlu0 %v2177, 16
        %v2321 = vpop.permute.xlu0 %2320
        %2322 = vrot.lane.b32.xlu0 %v2178, 16
        %v2323 = vpop.permute.xlu0 %2322
        %2324 = vrot.lane.b32.xlu0 %v2179, 16
        %v2325 = vpop.permute.xlu0 %2324
        %2326 = vrot.lane.b32.xlu0 %v2180, 16
        %v2327 = vpop.permute.xlu0 %2326
        %2328 = vrot.lane.b32.xlu0 %v2181, 16
        %v2329 = vpop.permute.xlu0 %2328
        %2330 = vrot.lane.b32.xlu0 %v2182, 16
        %v2331 = vpop.permute.xlu0 %2330
        %2332 = vrot.lane.b32.xlu0 %v2183, 16
        %v2333 = vpop.permute.xlu0 %2332
        %v2342 = vsel %vm1466, %v1658, %v2319
        %v2343 = vsel %vm1466, %v1659, %v2321
        %v2344 = vsel %vm1466, %v1660, %v2323
        %v2345 = vsel %vm1466, %v1661, %v2325
        %v2346 = vsel %vm1466, %v1662, %v2327
        %v2347 = vsel %vm1466, %v1663, %v2329
        %v2348 = vsel %vm1466, %v1664, %v2331
        %v2349 = vsel %vm1466, %v1665, %v2333
        %v2350 = vpack.c.bf16 %v2343, %v2342
        %v2351 = vpack.c.bf16 %v2345, %v2344
        %v2352 = vpack.c.bf16 %v2347, %v2346
        %v2353 = vpack.c.bf16 %v2349, %v2348
        %v2354 = vld [vmem:[%s9] sm:$0xf]
        %v2355 = vld [vmem:[%s9 + $0x4] sm:$0xf]
        %v2356 = vld [vmem:[%s9 + $0x8] sm:$0xf]
        %v2357 = vld [vmem:[%s9 + $0xc] sm:$0xf]
        %v2358 = vld [vmem:[%s9 + $0x10] sm:$0xf]
        %v2359 = vld [vmem:[%s9 + $0x14] sm:$0xf]
        %v2360 = vld [vmem:[%s10] sm:$0x1]
        %v2362 = vlaneseq
        %v2363 = vshrl.u32 %v2362, 7
        %v2364 = vsub.s32 0, %v2363
        %v2365 = vrot.slane %v2360, %v2364
        %v2373 = vunpack.c.l.b16 %v2354
        %v2374 = vunpack.c.l.b16 %v2355
        %v2375 = vunpack.c.l.b16 %v2356
        %v2376 = vunpack.c.l.b16 %v2357
        %v2377 = vunpack.c.l.b16 %v2358
        %v2378 = vunpack.c.l.b16 %v2359
        %v2379 = vpack.c.b16 %v2374, %v2373
        %v2380 = vpack.c.b16 %v2376, %v2375
        %v2381 = vpack.c.b16 %v2378, %v2377
        %v2386 = vsel %vm1502, %v2350, 0
        %v2389 = vsel %vm1502, %v2351, 0
        %v2392 = vsel %vm1502, %v2352, 0
        %v2395 = vsel %vm1502, %v2353, 0
        %2397 = vmatprep.subr.bf16.mxu0 0
        %2398 = vmatpush1.bf16.msra.mxu0 0
        %2399 = vmatprep.subr.bf16.mxu0 0
        %2400 = vmatpush1.bf16.msra.mxu0 0
        %2401 = vmatprep.subr.bf16.mxu0 0
        %2402 = vmatpush1.bf16.msra.mxu0 0
        %2403 = vmatprep.subr.bf16.mxu0 0
        %2404 = vmatpush1.bf16.msra.mxu0 0
        %2405 = vmatprep.subr.bf16.mxu0 0
        %2406 = vmatpush1.bf16.msra.mxu0 0
        %2407 = vmatprep.subr.bf16.mxu0 0
        %2408 = vmatpush1.bf16.msra.mxu0 %v2381
        %2409 = vmatprep.subr.bf16.mxu0 0
        %2410 = vmatpush1.bf16.msra.mxu0 %v2380
        %2411 = vmatprep.subr.bf16.mxu0 0
        %2412 = vmatpush1.bf16.msra.mxu0 %v2379
        %2413 = vmatprep.subr.bf16.mxu0 0
        %2414 = vmatpush2.bf16.msra.mxu0 0
        %2415 = vmatprep.subr.bf16.mxu0 0
        %2416 = vmatpush2.bf16.msra.mxu0 0
        %2417 = vmatprep.subr.bf16.mxu0 0
        %2418 = vmatpush2.bf16.msra.mxu0 0
        %2419 = vmatprep.subr.bf16.mxu0 0
        %2420 = vmatpush2.bf16.msra.mxu0 0
        %2421 = vmatprep.subr.bf16.mxu0 0
        %2422 = vmatpush2.bf16.msra.mxu0 0
        %2423 = vmatprep.subr.bf16.mxu0 0
        %2424 = vmatpush2.bf16.msra.mxu0 0
        %2425 = vmatprep.subr.bf16.mxu0 0
        %2426 = vmatpush2.bf16.msra.mxu0 0
        %2427 = vmatprep.subr.bf16.mxu0 0
        %2428 = vmatpush2.bf16.msra.mxu0 0
        %2429 = vmatprep.mubr.bf16.mxu0 0
        %2430 = vmatmul.mubr.bf16.gmra.mxu0 %v2386
        %v2431 = vpop.f32.mrf.mxu0
        %v2432 = vadd.f32 %v2365, %v2431
        %v2433 = vpop.f32.mrf.mxu0
        %v2434 = vpop.f32.mrf.mxu0
        %v2435 = vadd.f32 %v2365, %v2434
        %v2436 = vpop.f32.mrf.mxu0
        %2437 = vmatprep.mubr.bf16.mxu0 0
        %2438 = vmatmul.mubr.bf16.gmra.mxu0 %v2389
        %v2439 = vpop.f32.mrf.mxu0
        %v2440 = vadd.f32 %v2365, %v2439
        %v2441 = vpop.f32.mrf.mxu0
        %v2442 = vpop.f32.mrf.mxu0
        %v2443 = vadd.f32 %v2365, %v2442
        %v2444 = vpop.f32.mrf.mxu0
        %2445 = vmatprep.mubr.bf16.mxu0 0
        %2446 = vmatmul.mubr.bf16.gmra.mxu0 %v2392
        %v2447 = vpop.f32.mrf.mxu0
        %v2448 = vadd.f32 %v2365, %v2447
        %v2449 = vpop.f32.mrf.mxu0
        %v2450 = vpop.f32.mrf.mxu0
        %v2451 = vadd.f32 %v2365, %v2450
        %v2452 = vpop.f32.mrf.mxu0
        %2453 = vmatprep.mubr.bf16.mxu0 0
        %2454 = vmatmul.mubr.bf16.gmra.mxu0 %v2395
        %v2455 = vpop.f32.mrf.mxu0
        %v2456 = vadd.f32 %v2365, %v2455
        %v2457 = vpop.f32.mrf.mxu0
        %v2458 = vpop.f32.mrf.mxu0
        %v2459 = vadd.f32 %v2365, %v2458
        %v2460 = vpop.f32.mrf.mxu0
        %2461 = vdwg.mxu0
        %v2462 = vmax.f32 %v2432, 0.0
        %v2463 = vmax.f32 %v2435, 0.0
        %v2464 = vmax.f32 %v2440, 0.0
        %v2465 = vmax.f32 %v2443, 0.0
        %v2466 = vmax.f32 %v2448, 0.0
        %v2467 = vmax.f32 %v2451, 0.0
        %v2468 = vmax.f32 %v2456, 0.0
        %v2469 = vmax.f32 %v2459, 0.0
        %v2470 = vpack.c.bf16 %v2463, %v2462
        %v2471 = vpack.c.bf16 %v2465, %v2464
        %v2472 = vpack.c.bf16 %v2467, %v2466
        %v2473 = vpack.c.bf16 %v2469, %v2468
        %v2474 = vld [vmem:[%s11] sm:$0xf]
        %v2475 = vld [vmem:[%s11 + $0x4] sm:$0xf]
        %v2476 = vld [vmem:[%s11 + $0x8] sm:$0xf]
        %v2477 = vld [vmem:[%s11 + $0xc] sm:$0xf]
        %v2478 = vld [vmem:[%s12] sm:$0x1]
        %v2480 = vlaneseq
        %v2481 = vshrl.u32 %v2480, 7
        %v2482 = vsub.s32 0, %v2481
        %v2483 = vrot.slane %v2478, %v2482
        %v2489 = vunpack.c.l.b16 %v2474
        %v2490 = vunpack.c.l.b16 %v2475
        %v2491 = vunpack.c.l.b16 %v2476
        %v2492 = vunpack.c.l.b16 %v2477
        %v2493 = vpack.c.b16 %v2490, %v2489
        %v2494 = vpack.c.b16 %v2492, %v2491
        %v2498 = vsel %vm1484, %v2470, 0
        %v2501 = vsel %vm1484, %v2471, 0
        %v2504 = vsel %vm1484, %v2472, 0
        %v2507 = vsel %vm1484, %v2473, 0
        %2509 = vmatprep.subr.bf16.mxu0 0
        %2510 = vmatpush1.bf16.msra.mxu0 0
        %2511 = vmatprep.subr.bf16.mxu0 0
        %2512 = vmatpush1.bf16.msra.mxu0 0
        %2513 = vmatprep.subr.bf16.mxu0 0
        %2514 = vmatpush1.bf16.msra.mxu0 0
        %2515 = vmatprep.subr.bf16.mxu0 0
        %2516 = vmatpush1.bf16.msra.mxu0 0
        %2517 = vmatprep.subr.bf16.mxu0 0
        %2518 = vmatpush1.bf16.msra.mxu0 0
        %2519 = vmatprep.subr.bf16.mxu0 0
        %2520 = vmatpush1.bf16.msra.mxu0 0
        %2521 = vmatprep.subr.bf16.mxu0 0
        %2522 = vmatpush1.bf16.msra.mxu0 %v2494
        %2523 = vmatprep.subr.bf16.mxu0 0
        %2524 = vmatpush1.bf16.msra.mxu0 %v2493
        %2525 = vmatprep.subr.bf16.mxu0 0
        %2526 = vmatpush2.bf16.msra.mxu0 0
        %2527 = vmatprep.subr.bf16.mxu0 0
        %2528 = vmatpush2.bf16.msra.mxu0 0
        %2529 = vmatprep.subr.bf16.mxu0 0
        %2530 = vmatpush2.bf16.msra.mxu0 0
        %2531 = vmatprep.subr.bf16.mxu0 0
        %2532 = vmatpush2.bf16.msra.mxu0 0
        %2533 = vmatprep.subr.bf16.mxu0 0
        %2534 = vmatpush2.bf16.msra.mxu0 0
        %2535 = vmatprep.subr.bf16.mxu0 0
        %2536 = vmatpush2.bf16.msra.mxu0 0
        %2537 = vmatprep.subr.bf16.mxu0 0
        %2538 = vmatpush2.bf16.msra.mxu0 0
        %2539 = vmatprep.subr.bf16.mxu0 0
        %2540 = vmatpush2.bf16.msra.mxu0 0
        %2541 = vmatprep.mubr.bf16.mxu0 0
        %2542 = vmatmul.mubr.bf16.gmra.mxu0 %v2498
        %v2543 = vpop.f32.mrf.mxu0
        %v2544 = vadd.f32 %v2483, %v2543
        %v2545 = vpop.f32.mrf.mxu0
        %v2546 = vpop.f32.mrf.mxu0
        %v2547 = vadd.f32 %v2483, %v2546
        %v2548 = vpop.f32.mrf.mxu0
        %2549 = vmatprep.mubr.bf16.mxu0 0
        %2550 = vmatmul.mubr.bf16.gmra.mxu0 %v2501
        %v2551 = vpop.f32.mrf.mxu0
        %v2552 = vadd.f32 %v2483, %v2551
        %v2553 = vpop.f32.mrf.mxu0
        %v2554 = vpop.f32.mrf.mxu0
        %v2555 = vadd.f32 %v2483, %v2554
        %v2556 = vpop.f32.mrf.mxu0
        %2557 = vmatprep.mubr.bf16.mxu0 0
        %2558 = vmatmul.mubr.bf16.gmra.mxu0 %v2504
        %v2559 = vpop.f32.mrf.mxu0
        %v2560 = vadd.f32 %v2483, %v2559
        %v2561 = vpop.f32.mrf.mxu0
        %v2562 = vpop.f32.mrf.mxu0
        %v2563 = vadd.f32 %v2483, %v2562
        %v2564 = vpop.f32.mrf.mxu0
        %2565 = vmatprep.mubr.bf16.mxu0 0
        %2566 = vmatmul.mubr.bf16.gmra.mxu0 %v2507
        %v2567 = vpop.f32.mrf.mxu0
        %v2568 = vadd.f32 %v2483, %v2567
        %v2569 = vpop.f32.mrf.mxu0
        %v2570 = vpop.f32.mrf.mxu0
        %v2571 = vadd.f32 %v2483, %v2570
        %v2572 = vpop.f32.mrf.mxu0
        %2573 = vdwg.mxu0
        %vm2574 = vcmp.ge.s32.totalorder %v2290, 10
        %vm2575 = vcmp.lt.s32.totalorder %v2290, 20
        %vm2576 = vmand %vm2574, %vm2575
        %v2577 = vxor.u32 %v2544, 2147483648
        %v2578 = vxor.u32 %v2547, 2147483648
        %v2579 = vxor.u32 %v2552, 2147483648
        %v2580 = vxor.u32 %v2555, 2147483648
        %v2581 = vxor.u32 %v2560, 2147483648
        %v2582 = vxor.u32 %v2563, 2147483648
        %v2583 = vxor.u32 %v2568, 2147483648
        %v2584 = vxor.u32 %v2571, 2147483648
        %v2585 = vmul.f32 %v2577, 1.442695
        %v2586 = vpow.pop %v2585
        %v2587 = vmul.f32 %v2578, 1.442695
        %v2588 = vpow.pop %v2587
        %v2589 = vmul.f32 %v2579, 1.442695
        %v2590 = vpow.pop %v2589
        %v2591 = vmul.f32 %v2580, 1.442695
        %v2592 = vpow.pop %v2591
        %v2593 = vmul.f32 %v2581, 1.442695
        %v2594 = vpow.pop %v2593
        %v2595 = vmul.f32 %v2582, 1.442695
        %v2596 = vpow.pop %v2595
        %v2597 = vmul.f32 %v2583, 1.442695
        %v2598 = vpow.pop %v2597
        %v2599 = vmul.f32 %v2584, 1.442695
        %v2600 = vpow.pop %v2599
        %v2601 = vadd.f32 %v2586, 1.0
        %v2602 = vadd.f32 %v2588, 1.0
        %v2603 = vadd.f32 %v2590, 1.0
        %v2604 = vadd.f32 %v2592, 1.0
        %v2605 = vadd.f32 %v2594, 1.0
        %v2606 = vadd.f32 %v2596, 1.0
        %v2607 = vadd.f32 %v2598, 1.0
        %v2608 = vadd.f32 %v2600, 1.0
        %v2609 = vrcp.pop %v2601
        %v2610 = vmul.f32 1.0, %v2609
        %v2611 = vrcp.pop %v2602
        %v2612 = vmul.f32 1.0, %v2611
        %v2613 = vrcp.pop %v2603
        %v2614 = vmul.f32 1.0, %v2613
        %v2615 = vrcp.pop %v2604
        %v2616 = vmul.f32 1.0, %v2615
        %v2617 = vrcp.pop %v2605
        %v2618 = vmul.f32 1.0, %v2617
        %v2619 = vrcp.pop %v2606
        %v2620 = vmul.f32 1.0, %v2619
        %v2621 = vrcp.pop %v2607
        %v2622 = vmul.f32 1.0, %v2621
        %v2623 = vrcp.pop %v2608
        %v2624 = vmul.f32 1.0, %v2623
        %v2625 = vsel %vm2576, %v2610, %v2544
        %v2626 = vsel %vm2576, %v2612, %v2547
        %v2627 = vsel %vm2576, %v2614, %v2552
        %v2628 = vsel %vm2576, %v2616, %v2555
        %v2629 = vsel %vm2576, %v2618, %v2560
        %v2630 = vsel %vm2576, %v2620, %v2563
        %v2631 = vsel %vm2576, %v2622, %v2568
        %v2632 = vsel %vm2576, %v2624, %v2571
        %v2633 = vpack.c.bf16 %v2626, %v2625
        %v2634 = vpack.c.bf16 %v2628, %v2627
        %v2635 = vpack.c.bf16 %v2630, %v2629
        %v2636 = vpack.c.bf16 %v2632, %v2631
        %v2641 = vunpack.c.l.b16 %v2633
        %v2642 = vunpack.c.h.b16 %v2633
        %v2643 = vunpack.c.l.b16 %v2634
        %v2644 = vunpack.c.h.b16 %v2634
        %v2645 = vunpack.c.l.b16 %v2635
        %v2646 = vunpack.c.h.b16 %v2635
        %v2647 = vunpack.c.l.b16 %v2636
        %v2648 = vunpack.c.h.b16 %v2636
        %v2649 = vpack.c.b16 %v2641, %v2641
        %v2650 = vpack.c.b16 %v2642, %v2642
        %v2651 = vpack.c.b16 %v2643, %v2643
        %v2652 = vpack.c.b16 %v2644, %v2644
        %v2653 = vpack.c.b16 %v2645, %v2645
        %v2654 = vpack.c.b16 %v2646, %v2646
        %v2655 = vpack.c.b16 %v2647, %v2647
        %v2656 = vpack.c.b16 %v2648, %v2648
        %2665 = vst [vmem:[%s512] sm:$0xf] %v2649
        %2666 = vst [vmem:[%s512 + $0x4] sm:$0xf] %v2650
        %2667 = vst [vmem:[%s512 + $0x8] sm:$0xf] %v2651
        %2668 = vst [vmem:[%s512 + $0xc] sm:$0xf] %v2652
        %2669 = vst [vmem:[%s512 + $0x10] sm:$0xf] %v2653
        %2670 = vst [vmem:[%s512 + $0x14] sm:$0xf] %v2654
        %2671 = vst [vmem:[%s512 + $0x18] sm:$0xf] %v2655
        %2672 = vst [vmem:[%s512 + $0x1c] sm:$0xf] %v2656
        %s2673 = sand.u32 %s316, 1
        %s2674 = scalar_lea.sflag [#allocation3], %s2673
        %s2675 = sand.u32 %s316, 1
        %s2676 = scalar_lea.vmem [#allocation2], %s2675
        %p2677 = scmp.lt.s32.totalorder %s30, 1
        %s2678 = scalar_select %p2677, %s30, 1
        %s2679 = scalar_lea.vmem %s14, %s2678
        %p2680 = scmp.lt.s32.totalorder %s30, 1
        %s2681 = scalar_select %p2680, %s30, 1
        %s2682 = smul.addr %s2681, 8
        %s2683 = smul.addr %s2682, 4
        %s2684 = scalar_lea.vmem %s15, %s2683
        // Predicated region
        $region73: #{generic_forward.1} parent=71 // pred_check
          %p2685 = pneg %p326
        $region74: #{generic_forward.1} parent=71 // pred_check_branch
          %2687 = sbr.rel (%p2685) target = $region76
        $region75: #{generic_forward.1} parent=71 // pred_region
          %s2689 = ssub.s32 16, 16
          %2690 = vsyncadd %s2674, %s2689
          %s2691 = smul.addr %s30, 16
          %s2692 = scalar_lea.hbm %s13, %s2691
          %s2694 = sshll.u32 %s2676, 4
          %s2695 = int_to_ptr.vmem [resolvable:$true] %s2694
          %2697 = dma.vmem_to_hbm [thread:$0]  %s2695, 16, %s2692, %s2674
        $region76: #{generic_forward.1} parent=71 // pred_fallthru
          _
        // Predicated region
        $region77: #{generic_forward.1} parent=71 // pred_check
          %p2698 = pneg %p352
        $region78: #{generic_forward.1} parent=71 // pred_check_branch
          %2700 = sbr.rel (%p2698) target = $region80
        $region79: #{generic_forward.1} parent=71 // pred_region
          _
        $region80: #{generic_forward.1} parent=71 // pred_fallthru
          _
        // Predicated region
        $region81: #{generic_forward.1} parent=71 // pred_check
          %p2701 = pneg %p378
        $region82: #{generic_forward.1} parent=71 // pred_check_branch
          %2703 = sbr.rel (%p2701) target = $region84
        $region83: #{generic_forward.1} parent=71 // pred_region
          _
        $region84: #{generic_forward.1} parent=71 // pred_fallthru
          _
      $region72: #{generic_forward.1} parent=5 // pred_fallthru
        _
      %p2704 = scmp.le.s32.totalorder 2, %s25
      // Predicated region
      $region85: #{generic_forward.1} parent=5 // pred_check
        %p2705 = pneg %p2704
      $region86: #{generic_forward.1} parent=5 // pred_check_branch
        %2707 = sbr.rel (%p2705) target = $region88
      $region87: #{generic_forward.1} parent=5 // pred_region
        %s2708 = ssub.s32 %s25, 2
        // Predicated region
        $region89: #{generic_forward.1} parent=87 // pred_check
          %p2709 = pneg %p332
        $region90: #{generic_forward.1} parent=87 // pred_check_branch
          %2711 = sbr.rel (%p2709) target = $region92
        $region91: #{generic_forward.1} parent=87 // pred_region
          %s2712 = sand.u32 %s317, 1
          %s2713 = scalar_lea.sflag [#allocation3], %s2712
          %s2714 = sand.u32 %s317, 1
          %s2715 = scalar_lea.vmem [#allocation2], %s2714
          %2716 = dma.done %s2713, 16
        $region92: #{generic_forward.1} parent=87 // pred_fallthru
          _
        // Predicated region
        $region93: #{generic_forward.1} parent=87 // pred_check
          %p2717 = pneg %p358
        $region94: #{generic_forward.1} parent=87 // pred_check_branch
          %2719 = sbr.rel (%p2717) target = $region96
        $region95: #{generic_forward.1} parent=87 // pred_region
          %p2720 = scmp.lt.s32.totalorder %s31, 1
          %s2721 = scalar_select %p2720, %s31, 1
          %s2722 = scalar_lea.vmem %s14, %s2721
        $region96: #{generic_forward.1} parent=87 // pred_fallthru
          _
        // Predicated region
        $region97: #{generic_forward.1} parent=87 // pred_check
          %p2723 = pneg %p384
        $region98: #{generic_forward.1} parent=87 // pred_check_branch
          %2725 = sbr.rel (%p2723) target = $region100
        $region99: #{generic_forward.1} parent=87 // pred_region
          %p2726 = scmp.lt.s32.totalorder %s31, 1
          %s2727 = scalar_select %p2726, %s31, 1
          %s2728 = smul.addr %s2727, 8
          %s2729 = smul.addr %s2728, 4
          %s2730 = scalar_lea.vmem %s15, %s2729
        $region100: #{generic_forward.1} parent=87 // pred_fallthru
          _
      $region88: #{generic_forward.1} parent=5 // pred_fallthru
        _
    $region6: #{generic_forward.1} parent=1 // loop_footer
      %s29 = sadd.s32 1, %s25
    $region7: #{generic_forward.1} parent=1 // loop_footer_branch
      %24 = sbr.rel target = $region3
    $region8: #{generic_forward.1} parent=1 // loop_exit
      _
    %2731 = vsyncpa [#allocation3], 1
    %s2732 = scalar_lea.sflag [#allocation3], 1
    %2733 = vsyncpa %s2732, 1

</llo_original>
